<compile_context>
chip_gen: v5e
topology: v5e:2x2
jax: 0.10.0
libtpu: 0.0.40
codegen_flags: <defaults>
</compile_context>

<pallas_src>
import jax
import jax.numpy as jnp
import numpy as np
from jax import lax
from jax.experimental import pallas as pl
from jax.experimental.pallas import tpu as pltpu

EPS = 1e-6


def _softplus(x):
    # numerically stable softplus (matches torch.nn.functional.softplus)
    return jnp.maximum(x, 0.0) + jnp.log(1.0 + jnp.exp(-jnp.abs(x)))


def _make_kernel(*, mxu_dtype, emit_maps, resident, tile_n, n_valid, has_pad):
    def kernel(x_ref, wq_ref, bq_ref, wk_ref, bk_ref, wv_ref, bv_ref,
               g_ref, out_ref, *rest):
        if emit_maps:
            at_cam_ref, at_pam_ref = rest[0], rest[1]
            rest = rest[2:]
        energy_acc, kv_acc, ksum_acc, attn_sc = rest[:4]
        x_res = rest[4] if resident else None

        phase = pl.program_id(1)
        nt = pl.program_id(2)
        last = pl.num_programs(2) - 1
        off = pl.multiple_of(nt * tile_n, 128)

        # ---------- phase 0: accumulate per-batch statistics ----------
        @pl.when(phase == 0)
        def _():
            x = x_ref[0]                               # (C, tile_n) f32
            xm = x.astype(mxu_dtype)

            @pl.when(nt == 0)
            def _():
                energy_acc[...] = jnp.zeros_like(energy_acc)
                kv_acc[...] = jnp.zeros_like(kv_acc)
                ksum_acc[...] = jnp.zeros_like(ksum_acc)

            if resident:
                # Stash the tile so phase 1 never re-reads x from HBM.
                x_res[:, pl.ds(off, tile_n)] = x

            # CAM energy[c,d] += sum_n x[c,n] x[d,n].  Kept f32 with pinned
            # HIGHEST precision: the softmax of O(N)-magnitude energies is too
            # sensitive for reduced-precision MXU passes.
            energy_acc[...] += lax.dot_general(
                x, x, (((1,), (1,)), ((), ())),
                preferred_element_type=jnp.float32,
                precision=lax.Precision.HIGHEST)

            # PAM key / value for this tile.
            k = jnp.dot(wk_ref[...].astype(mxu_dtype), xm,
                        preferred_element_type=jnp.float32) + bk_ref[...]
            k = _softplus(k)                            # (Cq_pad, tile_n)
            if has_pad:
                # softplus(bias) != 0 on zero-padded columns -> mask K so the
                # padding is inert in both ksum and KV^T.
                col = off + lax.broadcasted_iota(jnp.int32, k.shape, 1)
                k = jnp.where(col < n_valid, k, 0.0)
            v = jnp.dot(wv_ref[...].astype(mxu_dtype), xm,
                        preferred_element_type=jnp.float32) + bv_ref[...]
            # KV^T[c,m] += sum_n V[c,n] K[m,n]
            kv_acc[...] += lax.dot_general(
                v.astype(mxu_dtype), k.astype(mxu_dtype),
                (((1,), (1,)), ((), ())),
                preferred_element_type=jnp.float32)     # (C, Cq_pad)
            ksum_acc[...] += jnp.sum(k, axis=-1, keepdims=True)

            @pl.when(nt == last)
            def _():
                # Finalize CAM attention: softmax(max(E)-E) == softmax(min(E)-E)
                # (per-row constant shift) -> single reduce instead of two.
                energy = energy_acc[...]
                e = jnp.min(energy, axis=-1, keepdims=True) - energy
                pexp = jnp.exp(e)
                row_sum = jnp.sum(pexp, axis=-1, keepdims=True)
                inv = pl.reciprocal(row_sum, approx=True)
                inv = inv * (2.0 - row_sum * inv)        # 1 Newton step
                attn_sc[...] = pexp * inv
                ksum_acc[...] += EPS

        # ---------- phase 1: emit outputs per N-tile ----------
        @pl.when(phase == 1)
        def _():
            if resident:
                x = x_res[:, pl.ds(off, tile_n)]         # VMEM, no HBM re-read
            else:
                x = x_ref[0]
            xm = x.astype(mxu_dtype)

            cam_out = jnp.dot(attn_sc[...].astype(mxu_dtype), xm,
                              preferred_element_type=jnp.float32)  # (C, tile_n)

            q = jnp.dot(wq_ref[...].astype(mxu_dtype), xm,
                        preferred_element_type=jnp.float32) + bq_ref[...]
            q = _softplus(q)                             # (Cq_pad, tile_n)
            denom = jnp.sum(q * ksum_acc[...], axis=0, keepdims=True)  # (1, tn)
            inv = pl.reciprocal(denom, approx=True)
            inv = inv * (2.0 - denom * inv)              # 1 Newton step
            pam_out = jnp.dot(kv_acc[...].astype(mxu_dtype),
                              q.astype(mxu_dtype),
                              preferred_element_type=jnp.float32) * inv

            gc = g_ref[0]
            gp = g_ref[1]
            # Folded output: (gc*cam_out + x) + (x + gp*pam_out)
            out_ref[0] = 2.0 * x + gc * cam_out + gp * pam_out
            if emit_maps:
                at_cam_ref[0] = cam_out.astype(at_cam_ref.dtype)
                at_pam_ref[0] = pam_out.astype(at_pam_ref.dtype)

    return kernel


def _round_up(v, m):
    return -(-v // m) * m


def _pad2_bytes(r, c, itemsize=4):
    # VMEM footprint of an (r, c) array padded to (8, 128) tiles.
    return _round_up(r, 8) * _round_up(c, 128) * itemsize


def _vmem_limit_bytes():
    # Per-generation scoped-VMEM budget: v5e/v6e (128 MiB phys) -> ~96 MiB,
    # v7x (64 MiB per TC) -> 48 MiB.  Conservative 48 MiB fallback if the
    # hardware query is unavailable.
    try:
        phys = int(pltpu.get_tpu_info().vmem_capacity_bytes)
        return max(32 << 20, min(phys * 3 // 4, 100 << 20))
    except Exception:
        return 48 << 20


def _plan(*, N_pad, C, Cq_pad, n_out_f32, n_out_attn, attn_itemsize,
          max_tile_n, x_resident, vmem_limit):
    """Pick (tile_n, x_resident) from the per-chip VMEM budget."""
    # Fixed VMEM: accumulators + CAM attention scratch + (double-buffered)
    # weight blocks.
    fixed = (2 * _pad2_bytes(C, C) + _pad2_bytes(C, Cq_pad)
             + _pad2_bytes(Cq_pad, 1))
    fixed += 2 * (2 * _pad2_bytes(Cq_pad, C) + 2 * _pad2_bytes(Cq_pad, 1)
                  + _pad2_bytes(C, C) + _pad2_bytes(C, 1))
    budget = int(vmem_limit * 0.85) - fixed

    # Per-lane-column bytes of the double-buffered streamed blocks:
    # 1 x-input + n_out_f32 fused outputs + n_out_attn attention maps.
    rows = _round_up(C, 8)
    per_col = 2 * rows * (4 + 4 * n_out_f32 + attn_itemsize * n_out_attn)

    x_res_bytes = _pad2_bytes(C, N_pad)
    if x_resident is None:
        x_resident = (x_res_bytes + 128 * per_col) <= budget
    if x_resident:
        budget -= x_res_bytes

    cap = max(128, (budget // per_col) // 128 * 128)
    if max_tile_n is not None:
        cap = min(cap, max(128, (max_tile_n // 128) * 128))
    tile_n = min(cap, N_pad)
    while N_pad % tile_n:
        tile_n -= 128
    return tile_n, x_resident


def pam_cam_pallas(x, p, *, mxu_dtype=jnp.bfloat16, return_attention=True,
                   attn_dtype=jnp.bfloat16, max_tile_n=None, x_resident=None):
    B, C, H, W = x.shape
    N = H * W
    N_pad = _round_up(N, 128)
    Cq = p['wq'].shape[0]
    Cq_pad = max(8, _round_up(Cq, 8))

    x_flat = x.reshape(B, C, N).astype(jnp.float32)
    if N_pad != N:
        x_flat = jnp.pad(x_flat, ((0, 0), (0, 0), (0, N_pad - N)))

    # Pad q/k projections to a full sublane group.  Padded bias = -1e4 so
    # softplus(pad rows) == 0 exactly -> no effect on KV, k_sum or denom.
    def pad_qk(w, b):
        w_p = jnp.zeros((Cq_pad, C), jnp.float32).at[:Cq, :].set(
            w.astype(jnp.float32))
        b_p = jnp.full((Cq_pad, 1), -1e4, jnp.float32).at[:Cq, 0].set(
            b.astype(jnp.float32))
        return w_p, b_p

    wq, bq = pad_qk(p['wq'], p['bq'])
    wk, bk = pad_qk(p['wk'], p['bk'])
    wv = p['wv'].astype(jnp.float32)
    bv = p['bv'].reshape(C, 1).astype(jnp.float32)
    gammas = jnp.stack([jnp.asarray(p['gamma_cam'], jnp.float32).reshape(()),
                        jnp.asarray(p['gamma_pam'], jnp.float32).reshape(())])

    n_attn = 2 if return_attention else 0
    attn_itemsize = np.dtype(attn_dtype).itemsize
    vmem_limit = _vmem_limit_bytes()
    tile_n, resident = _plan(
        N_pad=N_pad, C=C, Cq_pad=Cq_pad, n_out_f32=1, n_out_attn=n_attn,
        attn_itemsize=attn_itemsize, max_tile_n=max_tile_n,
        x_resident=x_resident, vmem_limit=vmem_limit)
    n_tiles = N_pad // tile_n
    last_blk = n_tiles - 1

    if resident:
        # Phase 1 reads x from the VMEM stash; park the x block on its last
        # index so no extra HBM DMAs are issued during phase 1.
        x_spec = pl.BlockSpec(
            (1, C, tile_n),
            lambda b, ph, nt: (b, 0, nt * (1 - ph) + last_blk * ph))
    else:
        x_spec = pl.BlockSpec((1, C, tile_n), lambda b, ph, nt: (b, 0, nt))

    # Phase 0: park on block 0 (index never changes -> no garbage write-back);
    # phase 1: walk the N-tiles.  Keep out_specs / phase ordering in sync with
    # this if the grid is ever restructured.
    out_spec = pl.BlockSpec((1, C, tile_n), lambda b, ph, nt: (b, 0, nt * ph))

    def full_spec(shape):
        nd = len(shape)
        return pl.BlockSpec(shape, lambda b, ph, nt, _nd=nd: (0,) * _nd)

    smem_spec = pl.BlockSpec(memory_space=pltpu.MemorySpace.SMEM)

    out_struct = jax.ShapeDtypeStruct((B, C, N_pad), jnp.float32)
    if return_attention:
        attn_struct = jax.ShapeDtypeStruct((B, C, N_pad), attn_dtype)
        out_shape = (out_struct, attn_struct, attn_struct)
        out_specs = [out_spec, out_spec, out_spec]
    else:
        out_shape = out_struct
        out_specs = out_spec

    scratch_shapes = [
        pltpu.VMEM((C, C), jnp.float32),        # energy accumulator
        pltpu.VMEM((C, Cq_pad), jnp.float32),   # KV^T accumulator
        pltpu.VMEM((Cq_pad, 1), jnp.float32),   # K row-sums (+eps)
        pltpu.VMEM((C, C), jnp.float32),        # finalized CAM attention
    ]
    if resident:
        scratch_shapes.append(pltpu.VMEM((C, N_pad), jnp.float32))  # x stash

    grid_spec = pltpu.PrefetchScalarGridSpec(
        num_scalar_prefetch=0,
        grid=(B, 2, n_tiles),
        in_specs=[
            x_spec,
            full_spec((Cq_pad, C)), full_spec((Cq_pad, 1)),
            full_spec((Cq_pad, C)), full_spec((Cq_pad, 1)),
            full_spec((C, C)), full_spec((C, 1)),
            smem_spec,
        ],
        out_specs=out_specs,
        scratch_shapes=scratch_shapes,
    )

    x_reads = 1 if resident else 2
    flops_per_b = (4 * C * C * N_pad                      # energy + cam_out
                   + 2 * C * N_pad * (2 * Cq_pad + C)     # q/k/v projections
                   + 4 * C * Cq_pad * N_pad)              # KV^T + pam_out
    bytes_per_b = (4 * C * N_pad * (x_reads + 1)
                   + attn_itemsize * C * N_pad * n_attn
                   + 4 * (2 * Cq_pad * C + C * C + 2 * Cq_pad + C))
    cost = pl.CostEstimate(
        flops=B * flops_per_b,
        transcendentals=B * (C * C + 4 * Cq_pad * N_pad),
        bytes_accessed=B * bytes_per_b,
    )

    kernel = _make_kernel(mxu_dtype=mxu_dtype, emit_maps=return_attention,
                          resident=resident, tile_n=tile_n, n_valid=N,
                          has_pad=(N_pad != N))

    outs = pl.pallas_call(
        kernel,
        out_shape=out_shape,
        grid_spec=grid_spec,
        compiler_params=pltpu.CompilerParams(
            dimension_semantics=("parallel", "arbitrary", "arbitrary"),
            vmem_limit_bytes=vmem_limit),
        cost_estimate=cost,
    )(x_flat, wq, bq, wk, bk, wv, bv, gammas)

    def unpad(o):
        return o[:, :, :N].reshape(B, C, H, W)

    if return_attention:
        out, at_cam, at_pam = outs
        return unpad(out), unpad(at_cam), unpad(at_pam)
    out = outs[0] if isinstance(outs, (tuple, list)) else outs
    return unpad(out)


def reference(x, p):
    # Pure-JAX mirror of the PyTorch forward (correctness checking only).
    B, C, H, W = x.shape
    N = H * W
    xf = x.reshape(B, C, N)
    # CAM
    energy = jnp.einsum('bcn,bdn->bcd', xf, xf)
    energy_new = jnp.max(energy, axis=-1, keepdims=True) - energy
    attention = jax.nn.softmax(energy_new, axis=-1)
    at_cam = jnp.einsum('bcd,bdn->bcn', attention, xf)
    cam = p['gamma_cam'] * at_cam + xf
    # PAM
    q = jnp.einsum('oc,bcn->bon', p['wq'], xf) + p['bq'][None, :, None]
    k = jnp.einsum('oc,bcn->bon', p['wk'], xf) + p['bk'][None, :, None]
    v = jnp.einsum('oc,bcn->bon', p['wv'], xf) + p['bv'][None, :, None]
    q = _softplus(q).transpose(0, 2, 1)          # (B, N, Cq)
    k = _softplus(k)                             # (B, Cq, N)
    kv = jnp.einsum('bmn,bcn->bmc', k, v)
    norm = 1.0 / jnp.einsum('bnc,bc->bn', q, jnp.sum(k, axis=-1) + EPS)
    at_pam = jnp.einsum('bnm,bmc,bn->bcn', q, kv, norm)
    pam = xf + p['gamma_pam'] * at_pam
    out = (cam + pam).reshape(B, C, H, W)
    return out, at_cam.reshape(B, C, H, W), at_pam.reshape(B, C, H, W)


if __name__ == "__main__":
    key = jax.random.PRNGKey(0)
    B, C, H, W = 2, 16, 16, 16          # in_ch=16 -> in_ch // 8 = 2 q/k channels
    Cq = C // 8
    ks = jax.random.split(key, 7)
    x = jax.random.normal(ks[0], (B, C, H, W), jnp.float32)

    bound = 1.0 / np.sqrt(C)            # mimic PyTorch Conv2d default init range
    params = {
        'wq': jax.random.uniform(ks[1], (Cq, C), jnp.float32, -bound, bound),
        'bq': jax.random.uniform(ks[2], (Cq,), jnp.float32, -bound, bound),
        'wk': jax.random.uniform(ks[3], (Cq, C), jnp.float32, -bound, bound),
        'bk': jax.random.uniform(ks[4], (Cq,), jnp.float32, -bound, bound),
        'wv': jax.random.uniform(ks[5], (C, C), jnp.float32, -bound, bound),
        'bv': jax.random.uniform(ks[6], (C,), jnp.float32, -bound, bound),
        # The module initializes gammas to 0; use non-zero (trained-like)
        # values so the fused out = 2x + gc*at_cam + gp*at_pam path is tested.
        'gamma_cam': jnp.array(0.5, jnp.float32),
        'gamma_pam': jnp.array(0.75, jnp.float32),
    }

    ref_out, ref_cam, ref_pam = reference(x, params)

    def f32(a):
        return np.asarray(jnp.asarray(a, jnp.float32))

    # 1) Default fast path: bf16 MXU operands (energy stays f32 / HIGHEST),
    #    bf16 attention-map writeback, auto x-residency, budget-derived tiling.
    out, at_cam, at_pam = jax.block_until_ready(pam_cam_pallas(x, params))
    assert np.allclose(f32(out), np.asarray(ref_out), rtol=5e-2, atol=5e-2)
    assert np.allclose(f32(at_cam), np.asarray(ref_cam), rtol=5e-2, atol=5e-2)
    assert np.allclose(f32(at_pam), np.asarray(ref_pam), rtol=5e-2, atol=5e-2)

    # 2) Full-f32 path, forced streaming (two HBM reads of x), small tiles so
    #    the multi-tile accumulation is exercised.
    out, at_cam, at_pam = jax.block_until_ready(pam_cam_pallas(
        x, params, mxu_dtype=jnp.float32, attn_dtype=jnp.float32,
        max_tile_n=128, x_resident=False))
    assert np.allclose(f32(out), np.asarray(ref_out), rtol=1e-3, atol=1e-3)
    assert np.allclose(f32(at_cam), np.asarray(ref_cam), rtol=1e-3, atol=1e-3)
    assert np.allclose(f32(at_pam), np.asarray(ref_pam), rtol=1e-3, atol=1e-3)

    # 3) Full-f32 path, forced x-residency with multi-tile stash / read-back.
    out, at_cam, at_pam = jax.block_until_ready(pam_cam_pallas(
        x, params, mxu_dtype=jnp.float32, attn_dtype=jnp.float32,
        max_tile_n=128, x_resident=True))
    assert np.allclose(f32(out), np.asarray(ref_out), rtol=1e-3, atol=1e-3)
    assert np.allclose(f32(at_pam), np.asarray(ref_pam), rtol=1e-3, atol=1e-3)

    # 4) Reduced write-back path: fused output only (1/3 of the HBM writes).
    out_only = jax.block_until_ready(
        pam_cam_pallas(x, params, return_attention=False))
    assert np.allclose(f32(out_only), np.asarray(ref_out), rtol=5e-2, atol=5e-2)

    # 5) Lane-unaligned spatial size (N = 9*9 = 81 -> padded to 128; padded K
    #    columns masked in-kernel so ksum / KV^T stay exact).
    x_u = jax.random.normal(jax.random.PRNGKey(1), (B, C, 9, 9), jnp.float32)
    ref_u, ref_cam_u, ref_pam_u = reference(x_u, params)
    out_u, cam_u, pam_u = jax.block_until_ready(pam_cam_pallas(
        x_u, params, mxu_dtype=jnp.float32, attn_dtype=jnp.float32))
    assert np.allclose(f32(out_u), np.asarray(ref_u), rtol=1e-3, atol=1e-3)
    assert np.allclose(f32(cam_u), np.asarray(ref_cam_u), rtol=1e-3, atol=1e-3)
    assert np.allclose(f32(pam_u), np.asarray(ref_pam_u), rtol=1e-3, atol=1e-3)

    print("KERNEL_OK")
</pallas_src>

<mosaic_0001>
module attributes {stable_mosaic.version = 11 : i64} {
  func.func @kernel(%arg0: i32, %arg1: i32, %arg2: i32, %arg3: memref<1x16x256xf32, #tpu.memory_space<vmem>>, %arg4: memref<8x16xf32, #tpu.memory_space<vmem>>, %arg5: memref<8x1xf32, #tpu.memory_space<vmem>>, %arg6: memref<8x16xf32, #tpu.memory_space<vmem>>, %arg7: memref<8x1xf32, #tpu.memory_space<vmem>>, %arg8: memref<16x16xf32, #tpu.memory_space<vmem>>, %arg9: memref<16x1xf32, #tpu.memory_space<vmem>>, %arg10: memref<2xf32, #tpu.memory_space<smem>>, %arg11: memref<1x16x256xf32, #tpu.memory_space<vmem>>, %arg12: memref<1x16x256xbf16, #tpu.memory_space<vmem>>, %arg13: memref<1x16x256xbf16, #tpu.memory_space<vmem>>, %arg14: memref<16x16xf32, #tpu.memory_space<vmem>>, %arg15: memref<16x8xf32, #tpu.memory_space<vmem>>, %arg16: memref<8x1xf32, #tpu.memory_space<vmem>>, %arg17: memref<16x16xf32, #tpu.memory_space<vmem>>, %arg18: memref<16x256xf32, #tpu.memory_space<vmem>>) attributes {dimension_semantics = [#tpu.dimension_semantics<parallel>, #tpu.dimension_semantics<arbitrary>, #tpu.dimension_semantics<arbitrary>], iteration_bounds = array<i64: 2, 2, 1>, scalar_prefetch = 0 : i64, scratch_operands = 5 : i64, tpu.core_type = #tpu.core_type<tc>, window_params = [{transform_indices = @transform_0, window_bounds = array<i64: 1, 16, 256>}, {pipeline_mode = #tpu.pipeline_mode<synchronous>, transform_indices = @transform_1, window_bounds = array<i64: 8, 16>}, {pipeline_mode = #tpu.pipeline_mode<synchronous>, transform_indices = @transform_2, window_bounds = array<i64: 8, 1>}, {pipeline_mode = #tpu.pipeline_mode<synchronous>, transform_indices = @transform_3, window_bounds = array<i64: 8, 16>}, {pipeline_mode = #tpu.pipeline_mode<synchronous>, transform_indices = @transform_4, window_bounds = array<i64: 8, 1>}, {pipeline_mode = #tpu.pipeline_mode<synchronous>, transform_indices = @transform_5, window_bounds = array<i64: 16, 16>}, {pipeline_mode = #tpu.pipeline_mode<synchronous>, transform_indices = @transform_6, window_bounds = array<i64: 16, 1>}, {transform_indices = @transform_7, window_bounds = array<i64: 2>}, {transform_indices = @transform_8, window_bounds = array<i64: 1, 16, 256>}, {transform_indices = @transform_9, window_bounds = array<i64: 1, 16, 256>}, {transform_indices = @transform_10, window_bounds = array<i64: 1, 16, 256>}]} {
    %c256_i32 = arith.constant 256 : i32
    %0 = arith.muli %arg2, %c256_i32 : i32
    %1 = tpu.assume_multiple %0, 128 : i32
    %c0_i32 = arith.constant 0 : i32
    %2 = arith.cmpi eq, %arg1, %c0_i32 : i32
    %3 = arith.extui %2 : i1 to i32
    %c0_i32_0 = arith.constant 0 : i32
    %4 = arith.cmpi ne, %3, %c0_i32_0 : i32
    scf.if %4 {
      %c0 = arith.constant 0 : index
      %c0_2 = arith.constant 0 : index
      %c0_3 = arith.constant 0 : index
      %8 = vector.load %arg3[%c0, %c0_2, %c0_3] : memref<1x16x256xf32, #tpu.memory_space<vmem>>, vector<1x16x256xf32>
      %9 = vector.shape_cast %8 : vector<1x16x256xf32> to vector<16x256xf32>
      %10 = arith.truncf %9 : vector<16x256xf32> to vector<16x256xbf16>
      %c0_i32_4 = arith.constant 0 : i32
      %11 = arith.cmpi eq, %arg2, %c0_i32_4 : i32
      %12 = arith.extui %11 : i1 to i32
      %c0_i32_5 = arith.constant 0 : i32
      %13 = arith.cmpi ne, %12, %c0_i32_5 : i32
      scf.if %13 {
        %cst_36 = arith.constant 0.000000e+00 : f32
        %56 = vector.broadcast %cst_36 : f32 to vector<16x16xf32>
        %c0_37 = arith.constant 0 : index
        %c0_38 = arith.constant 0 : index
        %57 = vector.load %arg14[%c0_37, %c0_38] : memref<16x16xf32, #tpu.memory_space<vmem>>, vector<16x16xf32>
        tpu.vector_store %arg14[%c0_37, %c0_38], %56 {strides = array<i32>} : memref<16x16xf32, #tpu.memory_space<vmem>>, vector<16x16xf32>,
        %cst_39 = arith.constant 0.000000e+00 : f32
        %58 = vector.broadcast %cst_39 : f32 to vector<16x8xf32>
        %c0_40 = arith.constant 0 : index
        %c0_41 = arith.constant 0 : index
        %59 = vector.load %arg15[%c0_40, %c0_41] : memref<16x8xf32, #tpu.memory_space<vmem>>, vector<16x8xf32>
        tpu.vector_store %arg15[%c0_40, %c0_41], %58 {strides = array<i32>} : memref<16x8xf32, #tpu.memory_space<vmem>>, vector<16x8xf32>,
        %cst_42 = arith.constant 0.000000e+00 : f32
        %60 = vector.broadcast %cst_42 : f32 to vector<8x1xf32>
        %c0_43 = arith.constant 0 : index
        %c0_44 = arith.constant 0 : index
        %61 = vector.load %arg16[%c0_43, %c0_44] : memref<8x1xf32, #tpu.memory_space<vmem>>, vector<8x1xf32>
        tpu.vector_store %arg16[%c0_43, %c0_44], %60 {strides = array<i32>} : memref<8x1xf32, #tpu.memory_space<vmem>>, vector<8x1xf32>,
      } else {
      }
      %c0_6 = arith.constant 0 : index
      %14 = arith.index_cast %1 : i32 to index
      %15 = vector.load %arg18[%c0_6, %14] : memref<16x256xf32, #tpu.memory_space<vmem>>, vector<16x256xf32>
      tpu.vector_store %arg18[%c0_6, %14], %9 {strides = array<i32>} : memref<16x256xf32, #tpu.memory_space<vmem>>, vector<16x256xf32>,
      %c0_7 = arith.constant 0 : index
      %c0_8 = arith.constant 0 : index
      %16 = vector.load %arg14[%c0_7, %c0_8] : memref<16x16xf32, #tpu.memory_space<vmem>>, vector<16x16xf32>
      %cst = arith.constant dense<0.000000e+00> : vector<16x16xf32>
      %17 = tpu.matmul %9, %9, %cst {dimension_numbers = #tpu.dot_dimension_numbers<[1], [1], [0], [0], [0, 0, 1, 0], [], []>, precision = #tpu.contract_precision<fp32>} : vector<16x256xf32>, vector<16x256xf32>, vector<16x16xf32> -> vector<16x16xf32>
      %18 = arith.addf %16, %17 : vector<16x16xf32>
      %c0_9 = arith.constant 0 : index
      %c0_10 = arith.constant 0 : index
      %19 = vector.load %arg14[%c0_9, %c0_10] : memref<16x16xf32, #tpu.memory_space<vmem>>, vector<16x16xf32>
      tpu.vector_store %arg14[%c0_9, %c0_10], %18 {strides = array<i32>} : memref<16x16xf32, #tpu.memory_space<vmem>>, vector<16x16xf32>,
      %c0_11 = arith.constant 0 : index
      %c0_12 = arith.constant 0 : index
      %20 = vector.load %arg6[%c0_11, %c0_12] : memref<8x16xf32, #tpu.memory_space<vmem>>, vector<8x16xf32>
      %21 = arith.truncf %20 : vector<8x16xf32> to vector<8x16xbf16>
      %cst_13 = arith.constant dense<0.000000e+00> : vector<8x256xf32>
      %22 = tpu.matmul %21, %10, %cst_13 {dimension_numbers = #tpu.dot_dimension_numbers<[1], [0], [0], [1], [0, 0, 1, 1], [], []>} : vector<8x16xbf16>, vector<16x256xbf16>, vector<8x256xf32> -> vector<8x256xf32>
      %c0_14 = arith.constant 0 : index
      %c0_15 = arith.constant 0 : index
      %23 = vector.load %arg7[%c0_14, %c0_15] : memref<8x1xf32, #tpu.memory_space<vmem>>, vector<8x1xf32>
      %24 = vector.broadcast %23 : vector<8x1xf32> to vector<8x256xf32>
      %25 = arith.addf %22, %24 : vector<8x256xf32>
      %cst_16 = arith.constant 0.000000e+00 : f32
      %26 = vector.broadcast %cst_16 : f32 to vector<8x256xf32>
      %27 = arith.maximumf %25, %26 : vector<8x256xf32>
      %28 = math.absf %25 : vector<8x256xf32>
      %cst_17 = arith.constant 0.000000e+00 : f32
      %29 = vector.broadcast %cst_17 : f32 to vector<8x256xf32>
      %30 = arith.subf %29, %28 : vector<8x256xf32>
      %31 = math.exp %30 : vector<8x256xf32>
      %cst_18 = arith.constant 1.000000e+00 : f32
      %32 = vector.broadcast %cst_18 : f32 to vector<8x256xf32>
      %33 = arith.addf %32, %31 : vector<8x256xf32>
      %34 = math.log %33 : vector<8x256xf32>
      %35 = arith.addf %27, %34 : vector<8x256xf32>
      %c0_19 = arith.constant 0 : index
      %c0_20 = arith.constant 0 : index
      %36 = vector.load %arg8[%c0_19, %c0_20] : memref<16x16xf32, #tpu.memory_space<vmem>>, vector<16x16xf32>
      %37 = arith.truncf %36 : vector<16x16xf32> to vector<16x16xbf16>
      %cst_21 = arith.constant dense<0.000000e+00> : vector<16x256xf32>
      %38 = tpu.matmul %37, %10, %cst_21 {dimension_numbers = #tpu.dot_dimension_numbers<[1], [0], [0], [1], [0, 0, 1, 1], [], []>} : vector<16x16xbf16>, vector<16x256xbf16>, vector<16x256xf32> -> vector<16x256xf32>
      %c0_22 = arith.constant 0 : index
      %c0_23 = arith.constant 0 : index
      %39 = vector.load %arg9[%c0_22, %c0_23] : memref<16x1xf32, #tpu.memory_space<vmem>>, vector<16x1xf32>
      %40 = vector.broadcast %39 : vector<16x1xf32> to vector<16x256xf32>
      %41 = arith.addf %38, %40 : vector<16x256xf32>
      %c0_24 = arith.constant 0 : index
      %c0_25 = arith.constant 0 : index
      %42 = vector.load %arg15[%c0_24, %c0_25] : memref<16x8xf32, #tpu.memory_space<vmem>>, vector<16x8xf32>
      %43 = arith.truncf %41 : vector<16x256xf32> to vector<16x256xbf16>
      %44 = arith.truncf %35 : vector<8x256xf32> to vector<8x256xbf16>
      %cst_26 = arith.constant dense<0.000000e+00> : vector<16x8xf32>
      %45 = tpu.matmul %43, %44, %cst_26 {dimension_numbers = #tpu.dot_dimension_numbers<[1], [1], [0], [0], [0, 0, 1, 0], [], []>} : vector<16x256xbf16>, vector<8x256xbf16>, vector<16x8xf32> -> vector<16x8xf32>
      %46 = arith.addf %42, %45 : vector<16x8xf32>
      %c0_27 = arith.constant 0 : index
      %c0_28 = arith.constant 0 : index
      %47 = vector.load %arg15[%c0_27, %c0_28] : memref<16x8xf32, #tpu.memory_space<vmem>>, vector<16x8xf32>
      tpu.vector_store %arg15[%c0_27, %c0_28], %46 {strides = array<i32>} : memref<16x8xf32, #tpu.memory_space<vmem>>, vector<16x8xf32>,
      %c0_29 = arith.constant 0 : index
      %c0_30 = arith.constant 0 : index
      %48 = vector.load %arg16[%c0_29, %c0_30] : memref<8x1xf32, #tpu.memory_space<vmem>>, vector<8x1xf32>
      %cst_31 = arith.constant dense<0.000000e+00> : vector<8xf32>
      %49 = vector.multi_reduction <add>, %35, %cst_31 [1] : vector<8x256xf32> to vector<8xf32>
      %50 = vector.shape_cast %49 : vector<8xf32> to vector<8x1xf32>
      %51 = arith.addf %48, %50 : vector<8x1xf32>
      %c0_32 = arith.constant 0 : index
      %c0_33 = arith.constant 0 : index
      %52 = vector.load %arg16[%c0_32, %c0_33] : memref<8x1xf32, #tpu.memory_space<vmem>>, vector<8x1xf32>
      tpu.vector_store %arg16[%c0_32, %c0_33], %51 {strides = array<i32>} : memref<8x1xf32, #tpu.memory_space<vmem>>, vector<8x1xf32>,
      %c0_i32_34 = arith.constant 0 : i32
      %53 = arith.cmpi eq, %arg2, %c0_i32_34 : i32
      %54 = arith.extui %53 : i1 to i32
      %c0_i32_35 = arith.constant 0 : i32
      %55 = arith.cmpi ne, %54, %c0_i32_35 : i32
      scf.if %55 {
        %c0_36 = arith.constant 0 : index
        %c0_37 = arith.constant 0 : index
        %56 = vector.load %arg14[%c0_36, %c0_37] : memref<16x16xf32, #tpu.memory_space<vmem>>, vector<16x16xf32>
        %cst_38 = arith.constant dense<0x7F800000> : vector<16xf32>
        %57 = vector.multi_reduction <minimumf>, %56, %cst_38 [1] : vector<16x16xf32> to vector<16xf32>
        %58 = vector.shape_cast %57 : vector<16xf32> to vector<16x1xf32>
        %59 = vector.broadcast %58 : vector<16x1xf32> to vector<16x16xf32>
        %60 = arith.subf %59, %56 : vector<16x16xf32>
        %61 = math.exp %60 : vector<16x16xf32>
        %cst_39 = arith.constant dense<0.000000e+00> : vector<16xf32>
        %62 = vector.multi_reduction <add>, %61, %cst_39 [1] : vector<16x16xf32> to vector<16xf32>
        %63 = vector.shape_cast %62 : vector<16xf32> to vector<16x1xf32>
        %64 = tpu.reciprocal %63 {approx = true} : vector<16x1xf32> -> vector<16x1xf32>
        %65 = arith.mulf %63, %64 : vector<16x1xf32>
        %cst_40 = arith.constant 2.000000e+00 : f32
        %66 = vector.broadcast %cst_40 : f32 to vector<16x1xf32>
        %67 = arith.subf %66, %65 : vector<16x1xf32>
        %68 = arith.mulf %64, %67 : vector<16x1xf32>
        %69 = vector.broadcast %68 : vector<16x1xf32> to vector<16x16xf32>
        %70 = arith.mulf %61, %69 : vector<16x16xf32>
        %c0_41 = arith.constant 0 : index
        %c0_42 = arith.constant 0 : index
        %71 = vector.load %arg17[%c0_41, %c0_42] : memref<16x16xf32, #tpu.memory_space<vmem>>, vector<16x16xf32>
        tpu.vector_store %arg17[%c0_41, %c0_42], %70 {strides = array<i32>} : memref<16x16xf32, #tpu.memory_space<vmem>>, vector<16x16xf32>,
        %c0_43 = arith.constant 0 : index
        %c0_44 = arith.constant 0 : index
        %72 = vector.load %arg16[%c0_43, %c0_44] : memref<8x1xf32, #tpu.memory_space<vmem>>, vector<8x1xf32>
        %cst_45 = arith.constant 9.99999997E-7 : f32
        %73 = vector.broadcast %cst_45 : f32 to vector<8x1xf32>
        %74 = arith.addf %72, %73 : vector<8x1xf32>
        %c0_46 = arith.constant 0 : index
        %c0_47 = arith.constant 0 : index
        %75 = vector.load %arg16[%c0_46, %c0_47] : memref<8x1xf32, #tpu.memory_space<vmem>>, vector<8x1xf32>
        tpu.vector_store %arg16[%c0_46, %c0_47], %74 {strides = array<i32>} : memref<8x1xf32, #tpu.memory_space<vmem>>, vector<8x1xf32>,
      } else {
      }
    } else {
    }
    %c1_i32 = arith.constant 1 : i32
    %5 = arith.cmpi eq, %arg1, %c1_i32 : i32
    %6 = arith.extui %5 : i1 to i32
    %c0_i32_1 = arith.constant 0 : i32
    %7 = arith.cmpi ne, %6, %c0_i32_1 : i32
    scf.if %7 {
      %c0 = arith.constant 0 : index
      %8 = arith.index_cast %1 : i32 to index
      %9 = vector.load %arg18[%c0, %8] : memref<16x256xf32, #tpu.memory_space<vmem>>, vector<16x256xf32>
      %10 = arith.truncf %9 : vector<16x256xf32> to vector<16x256xbf16>
      %c0_2 = arith.constant 0 : index
      %c0_3 = arith.constant 0 : index
      %11 = vector.load %arg17[%c0_2, %c0_3] : memref<16x16xf32, #tpu.memory_space<vmem>>, vector<16x16xf32>
      %12 = arith.truncf %11 : vector<16x16xf32> to vector<16x16xbf16>
      %cst = arith.constant dense<0.000000e+00> : vector<16x256xf32>
      %13 = tpu.matmul %12, %10, %cst {dimension_numbers = #tpu.dot_dimension_numbers<[1], [0], [0], [1], [0, 0, 1, 1], [], []>} : vector<16x16xbf16>, vector<16x256xbf16>, vector<16x256xf32> -> vector<16x256xf32>
      %c0_4 = arith.constant 0 : index
      %c0_5 = arith.constant 0 : index
      %14 = vector.load %arg4[%c0_4, %c0_5] : memref<8x16xf32, #tpu.memory_space<vmem>>, vector<8x16xf32>
      %15 = arith.truncf %14 : vector<8x16xf32> to vector<8x16xbf16>
      %cst_6 = arith.constant dense<0.000000e+00> : vector<8x256xf32>
      %16 = tpu.matmul %15, %10, %cst_6 {dimension_numbers = #tpu.dot_dimension_numbers<[1], [0], [0], [1], [0, 0, 1, 1], [], []>} : vector<8x16xbf16>, vector<16x256xbf16>, vector<8x256xf32> -> vector<8x256xf32>
      %c0_7 = arith.constant 0 : index
      %c0_8 = arith.constant 0 : index
      %17 = vector.load %arg5[%c0_7, %c0_8] : memref<8x1xf32, #tpu.memory_space<vmem>>, vector<8x1xf32>
      %18 = vector.broadcast %17 : vector<8x1xf32> to vector<8x256xf32>
      %19 = arith.addf %16, %18 : vector<8x256xf32>
      %cst_9 = arith.constant 0.000000e+00 : f32
      %20 = vector.broadcast %cst_9 : f32 to vector<8x256xf32>
      %21 = arith.maximumf %19, %20 : vector<8x256xf32>
      %22 = math.absf %19 : vector<8x256xf32>
      %cst_10 = arith.constant 0.000000e+00 : f32
      %23 = vector.broadcast %cst_10 : f32 to vector<8x256xf32>
      %24 = arith.subf %23, %22 : vector<8x256xf32>
      %25 = math.exp %24 : vector<8x256xf32>
      %cst_11 = arith.constant 1.000000e+00 : f32
      %26 = vector.broadcast %cst_11 : f32 to vector<8x256xf32>
      %27 = arith.addf %26, %25 : vector<8x256xf32>
      %28 = math.log %27 : vector<8x256xf32>
      %29 = arith.addf %21, %28 : vector<8x256xf32>
      %c0_12 = arith.constant 0 : index
      %c0_13 = arith.constant 0 : index
      %30 = vector.load %arg16[%c0_12, %c0_13] : memref<8x1xf32, #tpu.memory_space<vmem>>, vector<8x1xf32>
      %31 = vector.broadcast %30 : vector<8x1xf32> to vector<8x256xf32>
      %32 = arith.mulf %29, %31 : vector<8x256xf32>
      %cst_14 = arith.constant dense<0.000000e+00> : vector<256xf32>
      %33 = vector.multi_reduction <add>, %32, %cst_14 [0] : vector<8x256xf32> to vector<256xf32>
      %34 = vector.shape_cast %33 : vector<256xf32> to vector<1x256xf32>
      %35 = tpu.reciprocal %34 {approx = true} : vector<1x256xf32> -> vector<1x256xf32>
      %36 = arith.mulf %34, %35 : vector<1x256xf32>
      %cst_15 = arith.constant 2.000000e+00 : f32
      %37 = vector.broadcast %cst_15 : f32 to vector<1x256xf32>
      %38 = arith.subf %37, %36 : vector<1x256xf32>
      %39 = arith.mulf %35, %38 : vector<1x256xf32>
      %c0_16 = arith.constant 0 : index
      %c0_17 = arith.constant 0 : index
      %40 = vector.load %arg15[%c0_16, %c0_17] : memref<16x8xf32, #tpu.memory_space<vmem>>, vector<16x8xf32>
      %41 = arith.truncf %40 : vector<16x8xf32> to vector<16x8xbf16>
      %42 = arith.truncf %29 : vector<8x256xf32> to vector<8x256xbf16>
      %cst_18 = arith.constant dense<0.000000e+00> : vector<16x256xf32>
      %43 = tpu.matmul %41, %42, %cst_18 {dimension_numbers = #tpu.dot_dimension_numbers<[1], [0], [0], [1], [0, 0, 1, 1], [], []>} : vector<16x8xbf16>, vector<8x256xbf16>, vector<16x256xf32> -> vector<16x256xf32>
      %44 = vector.broadcast %39 : vector<1x256xf32> to vector<16x256xf32>
      %45 = arith.mulf %43, %44 : vector<16x256xf32>
      %c0_19 = arith.constant 0 : index
      %46 = memref.load %arg10[%c0_19] : memref<2xf32, #tpu.memory_space<smem>>
      %c1 = arith.constant 1 : index
      %47 = memref.load %arg10[%c1] : memref<2xf32, #tpu.memory_space<smem>>
      %cst_20 = arith.constant 2.000000e+00 : f32
      %48 = vector.broadcast %cst_20 : f32 to vector<16x256xf32>
      %49 = arith.mulf %48, %9 : vector<16x256xf32>
      %50 = vector.broadcast %46 : f32 to vector<16x256xf32>
      %51 = arith.mulf %50, %13 : vector<16x256xf32>
      %52 = arith.addf %49, %51 : vector<16x256xf32>
      %53 = vector.broadcast %47 : f32 to vector<16x256xf32>
      %54 = arith.mulf %53, %45 : vector<16x256xf32>
      %55 = arith.addf %52, %54 : vector<16x256xf32>
      %c0_21 = arith.constant 0 : index
      %c0_22 = arith.constant 0 : index
      %c0_23 = arith.constant 0 : index
      %56 = vector.load %arg11[%c0_21, %c0_22, %c0_23] : memref<1x16x256xf32, #tpu.memory_space<vmem>>, vector<1x16x256xf32>
      %57 = vector.shape_cast %56 : vector<1x16x256xf32> to vector<16x256xf32>
      %58 = vector.shape_cast %55 : vector<16x256xf32> to vector<1x16x256xf32>
      tpu.vector_store %arg11[%c0_21, %c0_22, %c0_23], %58 {strides = array<i32>} : memref<1x16x256xf32, #tpu.memory_space<vmem>>, vector<1x16x256xf32>,
      %59 = arith.truncf %13 : vector<16x256xf32> to vector<16x256xbf16>
      %c0_24 = arith.constant 0 : index
      %c0_25 = arith.constant 0 : index
      %c0_26 = arith.constant 0 : index
      %60 = vector.load %arg12[%c0_24, %c0_25, %c0_26] : memref<1x16x256xbf16, #tpu.memory_space<vmem>>, vector<1x16x256xbf16>
      %61 = vector.shape_cast %60 : vector<1x16x256xbf16> to vector<16x256xbf16>
      %62 = vector.shape_cast %59 : vector<16x256xbf16> to vector<1x16x256xbf16>
      tpu.vector_store %arg12[%c0_24, %c0_25, %c0_26], %62 {strides = array<i32>} : memref<1x16x256xbf16, #tpu.memory_space<vmem>>, vector<1x16x256xbf16>,
      %63 = arith.truncf %45 : vector<16x256xf32> to vector<16x256xbf16>
      %c0_27 = arith.constant 0 : index
      %c0_28 = arith.constant 0 : index
      %c0_29 = arith.constant 0 : index
      %64 = vector.load %arg13[%c0_27, %c0_28, %c0_29] : memref<1x16x256xbf16, #tpu.memory_space<vmem>>, vector<1x16x256xbf16>
      %65 = vector.shape_cast %64 : vector<1x16x256xbf16> to vector<16x256xbf16>
      %66 = vector.shape_cast %63 : vector<16x256xbf16> to vector<1x16x256xbf16>
      tpu.vector_store %arg13[%c0_27, %c0_28, %c0_29], %66 {strides = array<i32>} : memref<1x16x256xbf16, #tpu.memory_space<vmem>>, vector<1x16x256xbf16>,
    } else {
    }
    return
  }
  func.func @transform_0(%arg0: i32, %arg1: i32, %arg2: i32) -> (i32, i32, i32) {
    %c1_i32 = arith.constant 1 : i32
    %0 = arith.subi %c1_i32, %arg1 : i32
    %1 = arith.muli %arg2, %0 : i32
    %c0_i32 = arith.constant 0 : i32
    %2 = arith.muli %c0_i32, %arg1 : i32
    %3 = arith.addi %1, %2 : i32
    %c0_i32_0 = arith.constant 0 : i32
    %c0_i32_1 = arith.constant 0 : i32
    return %arg0, %c0_i32_0, %3 : i32, i32, i32
  }
  func.func @transform_1(%arg0: i32, %arg1: i32, %arg2: i32) -> (i32, i32) {
    %c0_i32 = arith.constant 0 : i32
    %c0_i32_0 = arith.constant 0 : i32
    %c0_i32_1 = arith.constant 0 : i32
    return %c0_i32, %c0_i32_0 : i32, i32
  }
  func.func @transform_2(%arg0: i32, %arg1: i32, %arg2: i32) -> (i32, i32) {
    %c0_i32 = arith.constant 0 : i32
    %c0_i32_0 = arith.constant 0 : i32
    %c0_i32_1 = arith.constant 0 : i32
    return %c0_i32, %c0_i32_0 : i32, i32
  }
  func.func @transform_3(%arg0: i32, %arg1: i32, %arg2: i32) -> (i32, i32) {
    %c0_i32 = arith.constant 0 : i32
    %c0_i32_0 = arith.constant 0 : i32
    %c0_i32_1 = arith.constant 0 : i32
    return %c0_i32, %c0_i32_0 : i32, i32
  }
  func.func @transform_4(%arg0: i32, %arg1: i32, %arg2: i32) -> (i32, i32) {
    %c0_i32 = arith.constant 0 : i32
    %c0_i32_0 = arith.constant 0 : i32
    %c0_i32_1 = arith.constant 0 : i32
    return %c0_i32, %c0_i32_0 : i32, i32
  }
  func.func @transform_5(%arg0: i32, %arg1: i32, %arg2: i32) -> (i32, i32) {
    %c0_i32 = arith.constant 0 : i32
    %c0_i32_0 = arith.constant 0 : i32
    %c0_i32_1 = arith.constant 0 : i32
    return %c0_i32, %c0_i32_0 : i32, i32
  }
  func.func @transform_6(%arg0: i32, %arg1: i32, %arg2: i32) -> (i32, i32) {
    %c0_i32 = arith.constant 0 : i32
    %c0_i32_0 = arith.constant 0 : i32
    %c0_i32_1 = arith.constant 0 : i32
    return %c0_i32, %c0_i32_0 : i32, i32
  }
  func.func @transform_7(%arg0: i32, %arg1: i32, %arg2: i32) -> i32 {
    %c0_i32 = arith.constant 0 : i32
    %c0_i32_0 = arith.constant 0 : i32
    return %c0_i32 : i32
  }
  func.func @transform_8(%arg0: i32, %arg1: i32, %arg2: i32) -> (i32, i32, i32) {
    %0 = arith.muli %arg2, %arg1 : i32
    %c0_i32 = arith.constant 0 : i32
    %c0_i32_0 = arith.constant 0 : i32
    return %arg0, %c0_i32, %0 : i32, i32, i32
  }
  func.func @transform_9(%arg0: i32, %arg1: i32, %arg2: i32) -> (i32, i32, i32) {
    %0 = arith.muli %arg2, %arg1 : i32
    %c0_i32 = arith.constant 0 : i32
    %c0_i32_0 = arith.constant 0 : i32
    return %arg0, %c0_i32, %0 : i32, i32, i32
  }
  func.func @transform_10(%arg0: i32, %arg1: i32, %arg2: i32) -> (i32, i32, i32) {
    %0 = arith.muli %arg2, %arg1 : i32
    %c0_i32 = arith.constant 0 : i32
    %c0_i32_0 = arith.constant 0 : i32
    return %arg0, %c0_i32, %0 : i32, i32, i32
  }
}

</mosaic_0001>

<llo_original>
// kernel: tpu_custom_call.1
$region0: #{tpu_custom_call.1}
  #allocation0 [shape = 'u32[]', space=smem, size = 0x4, offset = 0x4, fixed_abs, tag = 'smem constant byte address 0x4 - core index']
  #allocation1 [shape = 'u32[72,128]{1,0:T(1,128)}', space=vmem, size = 0x9000, scoped, tag = 'internal scratch']
  #allocation2 [shape = 'f32[16,16]{1,0:T(8,128)}', space=vmem, size = 0x2000, scoped, tag = 'scratch operand']
  #allocation3 [shape = 'f32[16,8]{1,0:T(8,128)}', space=vmem, size = 0x2000, scoped, tag = 'scratch operand']
  #allocation4 [shape = 'f32[8,1]{1,0:T(8,128)}', space=vmem, size = 0x1000, scoped, tag = 'scratch operand']
  #allocation5 [shape = 'f32[16,16]{1,0:T(8,128)}', space=vmem, size = 0x2000, scoped, tag = 'scratch operand']
  #allocation6 [shape = 'f32[16,256]{1,0:T(8,128)}', space=vmem, size = 0x4000, scoped, tag = 'scratch operand']
  %s0 = inlined_call_operand.hbm [shape: f32[2,16,256], index: 0, kind: input, shape index: {}]
  %s1 = inlined_call_operand.vmem [shape: f32[8,16], index: 1, kind: input, shape index: {}]
  %s2 = inlined_call_operand.vmem [shape: f32[8,1], index: 2, kind: input, shape index: {}]
  %s3 = inlined_call_operand.vmem [shape: f32[8,16], index: 3, kind: input, shape index: {}]
  %s4 = inlined_call_operand.vmem [shape: f32[8,1], index: 4, kind: input, shape index: {}]
  %s5 = inlined_call_operand.vmem [shape: f32[16,16], index: 5, kind: input, shape index: {}]
  %s6 = inlined_call_operand.vmem [shape: f32[16,1], index: 6, kind: input, shape index: {}]
  %s7 = inlined_call_operand.vmem [shape: f32[2], index: 7, kind: input, shape index: {}]
  %s8 = inlined_call_operand.hbm [shape: f32[2,16,256], index: 8, kind: output, shape index: {0}]
  %s9 = inlined_call_operand.hbm [shape: bf16[2,16,256], index: 9, kind: output, shape index: {1}]
  %s10 = inlined_call_operand.hbm [shape: bf16[2,16,256], index: 10, kind: output, shape index: {2}]
  %11 = xla_tuple %s8, %s9, %s10
  %s12 = sld [smem:[#allocation0]]
  $region105: #{tpu_custom_call.1} parent=0
    _
  %s14 = ssub.s32 1, %s12
  %s15 = scalar_select 0, %s14, %s12
  $region1: #{tpu_custom_call.1} parent=0
    #allocation7 [shape = 'u8[32768]{0}', space=vmem, size = 0x8000, scoped, tag = 'input window, operand 0']
    #allocation8 [shape = 's32[2]{0}', space=sflag, size = 0x8, scoped, tag = 'scoped memory for tpu_custom_call.1']
    #allocation9 [shape = 's32[2]{0}', space=sflag, size = 0x8, scoped, tag = 'scoped memory for tpu_custom_call.1']
    #allocation10 [shape = 's32[2]{0}', space=sflag, size = 0x8, scoped, tag = 'scoped memory for tpu_custom_call.1']
    #allocation11 [shape = 'u8[512]{0}', space=smem, size = 0x200, scoped, tag = 'input window, operand 7, single buffered']
    #allocation12 [shape = 'u8[32768]{0}', space=vmem, size = 0x8000, scoped, tag = 'output window, operand 0']
    #allocation13 [shape = 'u8[16384]{0}', space=vmem, size = 0x4000, scoped, tag = 'output window, operand 1']
    #allocation14 [shape = 's32[2]{0}', space=sflag, size = 0x8, scoped, tag = 'scoped memory for tpu_custom_call.1']
    #allocation15 [shape = 'u8[16384]{0}', space=vmem, size = 0x4000, scoped, tag = 'output window, operand 2']
    %16 = vsyncpa [#allocation8], 0
    %s17 = scalar_lea.sflag [#allocation8], 1
    %18 = vsyncpa %s17, 0
    %19 = vsyncpa [#allocation10], 0
    %20 = vsyncpa [#allocation9], 0
    %s21 = scalar_lea.sflag [#allocation9], 1
    %22 = vsyncpa %s21, 0
    %23 = vsyncpa [#allocation14], 0
    %s24 = scalar_lea.sflag [#allocation14], 1
    %25 = vsyncpa %s24, 0
    loop: start=0, step=1, limit=6
    $region2: #{tpu_custom_call.1} parent=1 // loop_pre_header
      _
    $region3: #{tpu_custom_call.1} parent=1 // loop_header
      %s27 = sphi 0, %s31
      %p28 = scmp.ge.s32.totalorder %s27, 6
      %s34 = sphi 0, %s53
      %s35 = sphi 0, %s49
      %s36 = sphi 0, %s45
      %s37 = sphi 0, %s34
      %s38 = sphi 0, %s35
      %s39 = sphi 0, %s36
      %s40 = sphi 0, %s37
      %s41 = sphi 0, %s38
      %s42 = sphi 0, %s39
      %s62 = sphi 0, %s64
      %s65 = sphi 0, %s62
      %s66 = sphi 0, %s65
      %s82 = sphi 0, %s66
      %s86 = sphi 0, %s86
      %s88 = sphi 0, %s86
      %s89 = sphi 0, %s88
      %s103 = sphi 0, %s89
      %s107 = sphi 0, %s107
      %s109 = sphi 0, %s107
      %s110 = sphi 0, %s109
      %s124 = sphi 0, %s110
      %s128 = sphi 0, %s128
      %s130 = sphi 0, %s128
      %s131 = sphi 0, %s130
      %s145 = sphi 0, %s131
      %s149 = sphi 0, %s149
      %s151 = sphi 0, %s149
      %s152 = sphi 0, %s151
      %s166 = sphi 0, %s152
      %s170 = sphi 0, %s170
      %s172 = sphi 0, %s170
      %s173 = sphi 0, %s172
      %s187 = sphi 0, %s173
      %s191 = sphi 0, %s191
      %s193 = sphi 0, %s191
      %s194 = sphi 0, %s193
      %s208 = sphi 0, %s194
      %s212 = sphi 0, %s212
      %s214 = sphi 0, %s212
      %s215 = sphi 0, %s214
      %s229 = sphi 0, %s215
      %s239 = sphi 0, %s241
      %s242 = sphi 0, %s239
      %s243 = sphi 0, %s242
      %s259 = sphi 0, %s243
      %s269 = sphi 0, %s271
      %s272 = sphi 0, %s269
      %s273 = sphi 0, %s272
      %s289 = sphi 0, %s273
      %s299 = sphi 0, %s301
      %s302 = sphi 0, %s299
      %s303 = sphi 0, %s302
      %s319 = sphi 0, %s303
    $region4: #{tpu_custom_call.1} parent=1 // loop_header_branch
      %30 = sbr.rel (%p28) target = $region8
    $region5: #{tpu_custom_call.1} parent=1 // loop_body
      %s32 = ssub.s32 %s27, 1
      %s33 = ssub.s32 %s27, 2
      %s43 = sadd.s32 1, %s36
      %p44 = scmp.ge.s32.totalorder %s43, 1
      %s45 = scalar_select %p44, 0, %s43
      %s46 = sadd.s32 1, %s35
      %s47 = scalar_select %p44, %s46, %s35
      %p48 = scmp.ge.s32.totalorder %s47, 2
      %s49 = scalar_select %p48, 0, %s47
      %s50 = sadd.s32 1, %s34
      %s51 = scalar_select %p48, %s50, %s34
      %p52 = scmp.ge.s32.totalorder %s51, 2
      %s53 = scalar_select %p52, 0, %s51
      %s54 = ssub.s32 1, %s35
      %s55 = smul.u32 %s36, %s54
      %s56 = ssub.s32 1, %s49
      %s57 = smul.u32 %s45, %s56
      %s58 = ssub.s32 %s34, %s53
      %s59 = ssub.s32 %s55, %s57
      %s60 = sor.u32 %s58, %s59
      %p61 = scmp.eq.s32.totalorder %s60, 0
      %s63 = sadd.s32 %s62, 1
      %s64 = scalar_select %p61, %s62, %s63
      %p67 = pneg %p61
      %p68 = scmp.eq.s32.totalorder %s27, 3
      %p69 = por %p67, %p68
      %p70 = scmp.ne.s32.totalorder %s62, %s65
      %p71 = scmp.eq.s32.totalorder %s27, 0
      %p72 = por %p70, %p71
      %p73 = scmp.ne.s32.totalorder %s62, %s65
      %p74 = scmp.eq.s32.totalorder %s32, 3
      %p75 = por %p73, %p74
      %p76 = scmp.ne.s32.totalorder %s65, %s66
      %p77 = scmp.eq.s32.totalorder %s32, 0
      %p78 = por %p76, %p77
      %p79 = scmp.ne.s32.totalorder %s65, %s66
      %p80 = scmp.eq.s32.totalorder %s33, 3
      %p81 = por %p79, %p80
      %p83 = scmp.ne.s32.totalorder %s66, %s82
      %p84 = scmp.eq.s32.totalorder %s33, 0
      %p85 = por %p83, %p84
      %s87 = sadd.s32 %s86, 1
      %p90 = scmp.eq.s32.totalorder %s27, 3
      %p91 = scmp.ne.s32.totalorder %s86, %s88
      %p92 = scmp.eq.s32.totalorder %s27, 0
      %p93 = por %p91, %p92
      %p94 = scmp.ne.s32.totalorder %s86, %s88
      %p95 = scmp.eq.s32.totalorder %s32, 3
      %p96 = por %p94, %p95
      %p97 = scmp.ne.s32.totalorder %s88, %s89
      %p98 = scmp.eq.s32.totalorder %s32, 0
      %p99 = por %p97, %p98
      %p100 = scmp.ne.s32.totalorder %s88, %s89
      %p101 = scmp.eq.s32.totalorder %s33, 3
      %p102 = por %p100, %p101
      %p104 = scmp.ne.s32.totalorder %s89, %s103
      %p105 = scmp.eq.s32.totalorder %s33, 0
      %p106 = por %p104, %p105
      %s108 = sadd.s32 %s107, 1
      %p111 = scmp.eq.s32.totalorder %s27, 3
      %p112 = scmp.ne.s32.totalorder %s107, %s109
      %p113 = scmp.eq.s32.totalorder %s27, 0
      %p114 = por %p112, %p113
      %p115 = scmp.ne.s32.totalorder %s107, %s109
      %p116 = scmp.eq.s32.totalorder %s32, 3
      %p117 = por %p115, %p116
      %p118 = scmp.ne.s32.totalorder %s109, %s110
      %p119 = scmp.eq.s32.totalorder %s32, 0
      %p120 = por %p118, %p119
      %p121 = scmp.ne.s32.totalorder %s109, %s110
      %p122 = scmp.eq.s32.totalorder %s33, 3
      %p123 = por %p121, %p122
      %p125 = scmp.ne.s32.totalorder %s110, %s124
      %p126 = scmp.eq.s32.totalorder %s33, 0
      %p127 = por %p125, %p126
      %s129 = sadd.s32 %s128, 1
      %p132 = scmp.eq.s32.totalorder %s27, 3
      %p133 = scmp.ne.s32.totalorder %s128, %s130
      %p134 = scmp.eq.s32.totalorder %s27, 0
      %p135 = por %p133, %p134
      %p136 = scmp.ne.s32.totalorder %s128, %s130
      %p137 = scmp.eq.s32.totalorder %s32, 3
      %p138 = por %p136, %p137
      %p139 = scmp.ne.s32.totalorder %s130, %s131
      %p140 = scmp.eq.s32.totalorder %s32, 0
      %p141 = por %p139, %p140
      %p142 = scmp.ne.s32.totalorder %s130, %s131
      %p143 = scmp.eq.s32.totalorder %s33, 3
      %p144 = por %p142, %p143
      %p146 = scmp.ne.s32.totalorder %s131, %s145
      %p147 = scmp.eq.s32.totalorder %s33, 0
      %p148 = por %p146, %p147
      %s150 = sadd.s32 %s149, 1
      %p153 = scmp.eq.s32.totalorder %s27, 3
      %p154 = scmp.ne.s32.totalorder %s149, %s151
      %p155 = scmp.eq.s32.totalorder %s27, 0
      %p156 = por %p154, %p155
      %p157 = scmp.ne.s32.totalorder %s149, %s151
      %p158 = scmp.eq.s32.totalorder %s32, 3
      %p159 = por %p157, %p158
      %p160 = scmp.ne.s32.totalorder %s151, %s152
      %p161 = scmp.eq.s32.totalorder %s32, 0
      %p162 = por %p160, %p161
      %p163 = scmp.ne.s32.totalorder %s151, %s152
      %p164 = scmp.eq.s32.totalorder %s33, 3
      %p165 = por %p163, %p164
      %p167 = scmp.ne.s32.totalorder %s152, %s166
      %p168 = scmp.eq.s32.totalorder %s33, 0
      %p169 = por %p167, %p168
      %s171 = sadd.s32 %s170, 1
      %p174 = scmp.eq.s32.totalorder %s27, 3
      %p175 = scmp.ne.s32.totalorder %s170, %s172
      %p176 = scmp.eq.s32.totalorder %s27, 0
      %p177 = por %p175, %p176
      %p178 = scmp.ne.s32.totalorder %s170, %s172
      %p179 = scmp.eq.s32.totalorder %s32, 3
      %p180 = por %p178, %p179
      %p181 = scmp.ne.s32.totalorder %s172, %s173
      %p182 = scmp.eq.s32.totalorder %s32, 0
      %p183 = por %p181, %p182
      %p184 = scmp.ne.s32.totalorder %s172, %s173
      %p185 = scmp.eq.s32.totalorder %s33, 3
      %p186 = por %p184, %p185
      %p188 = scmp.ne.s32.totalorder %s173, %s187
      %p189 = scmp.eq.s32.totalorder %s33, 0
      %p190 = por %p188, %p189
      %s192 = sadd.s32 %s191, 1
      %p195 = scmp.eq.s32.totalorder %s27, 3
      %p196 = scmp.ne.s32.totalorder %s191, %s193
      %p197 = scmp.eq.s32.totalorder %s27, 0
      %p198 = por %p196, %p197
      %p199 = scmp.ne.s32.totalorder %s191, %s193
      %p200 = scmp.eq.s32.totalorder %s32, 3
      %p201 = por %p199, %p200
      %p202 = scmp.ne.s32.totalorder %s193, %s194
      %p203 = scmp.eq.s32.totalorder %s32, 0
      %p204 = por %p202, %p203
      %p205 = scmp.ne.s32.totalorder %s193, %s194
      %p206 = scmp.eq.s32.totalorder %s33, 3
      %p207 = por %p205, %p206
      %p209 = scmp.ne.s32.totalorder %s194, %s208
      %p210 = scmp.eq.s32.totalorder %s33, 0
      %p211 = por %p209, %p210
      %s213 = sadd.s32 %s212, 1
      %p216 = scmp.eq.s32.totalorder %s27, 3
      %p217 = scmp.ne.s32.totalorder %s212, %s214
      %p218 = scmp.eq.s32.totalorder %s27, 0
      %p219 = por %p217, %p218
      %p220 = scmp.ne.s32.totalorder %s212, %s214
      %p221 = scmp.eq.s32.totalorder %s32, 3
      %p222 = por %p220, %p221
      %p223 = scmp.ne.s32.totalorder %s214, %s215
      %p224 = scmp.eq.s32.totalorder %s32, 0
      %p225 = por %p223, %p224
      %p226 = scmp.ne.s32.totalorder %s214, %s215
      %p227 = scmp.eq.s32.totalorder %s33, 3
      %p228 = por %p226, %p227
      %p230 = scmp.ne.s32.totalorder %s215, %s229
      %p231 = scmp.eq.s32.totalorder %s33, 0
      %p232 = por %p230, %p231
      %s233 = smul.u32 %s36, %s35
      %s234 = smul.u32 %s45, %s49
      %s235 = ssub.s32 %s34, %s53
      %s236 = ssub.s32 %s233, %s234
      %s237 = sor.u32 %s235, %s236
      %p238 = scmp.eq.s32.totalorder %s237, 0
      %s240 = sadd.s32 %s239, 1
      %s241 = scalar_select %p238, %s239, %s240
      %p244 = pneg %p238
      %p245 = scmp.eq.s32.totalorder %s27, 3
      %p246 = por %p244, %p245
      %p247 = scmp.ne.s32.totalorder %s239, %s242
      %p248 = scmp.eq.s32.totalorder %s27, 0
      %p249 = por %p247, %p248
      %p250 = scmp.ne.s32.totalorder %s239, %s242
      %p251 = scmp.eq.s32.totalorder %s32, 3
      %p252 = por %p250, %p251
      %p253 = scmp.ne.s32.totalorder %s242, %s243
      %p254 = scmp.eq.s32.totalorder %s32, 0
      %p255 = por %p253, %p254
      %p256 = scmp.ne.s32.totalorder %s242, %s243
      %p257 = scmp.eq.s32.totalorder %s33, 3
      %p258 = por %p256, %p257
      %p260 = scmp.ne.s32.totalorder %s243, %s259
      %p261 = scmp.eq.s32.totalorder %s33, 0
      %p262 = por %p260, %p261
      %s263 = smul.u32 %s36, %s35
      %s264 = smul.u32 %s45, %s49
      %s265 = ssub.s32 %s34, %s53
      %s266 = ssub.s32 %s263, %s264
      %s267 = sor.u32 %s265, %s266
      %p268 = scmp.eq.s32.totalorder %s267, 0
      %s270 = sadd.s32 %s269, 1
      %s271 = scalar_select %p268, %s269, %s270
      %p274 = pneg %p268
      %p275 = scmp.eq.s32.totalorder %s27, 3
      %p276 = por %p274, %p275
      %p277 = scmp.ne.s32.totalorder %s269, %s272
      %p278 = scmp.eq.s32.totalorder %s27, 0
      %p279 = por %p277, %p278
      %p280 = scmp.ne.s32.totalorder %s269, %s272
      %p281 = scmp.eq.s32.totalorder %s32, 3
      %p282 = por %p280, %p281
      %p283 = scmp.ne.s32.totalorder %s272, %s273
      %p284 = scmp.eq.s32.totalorder %s32, 0
      %p285 = por %p283, %p284
      %p286 = scmp.ne.s32.totalorder %s272, %s273
      %p287 = scmp.eq.s32.totalorder %s33, 3
      %p288 = por %p286, %p287
      %p290 = scmp.ne.s32.totalorder %s273, %s289
      %p291 = scmp.eq.s32.totalorder %s33, 0
      %p292 = por %p290, %p291
      %s293 = smul.u32 %s36, %s35
      %s294 = smul.u32 %s45, %s49
      %s295 = ssub.s32 %s34, %s53
      %s296 = ssub.s32 %s293, %s294
      %s297 = sor.u32 %s295, %s296
      %p298 = scmp.eq.s32.totalorder %s297, 0
      %s300 = sadd.s32 %s299, 1
      %s301 = scalar_select %p298, %s299, %s300
      %p304 = pneg %p298
      %p305 = scmp.eq.s32.totalorder %s27, 3
      %p306 = por %p304, %p305
      %p307 = scmp.ne.s32.totalorder %s299, %s302
      %p308 = scmp.eq.s32.totalorder %s27, 0
      %p309 = por %p307, %p308
      %p310 = scmp.ne.s32.totalorder %s299, %s302
      %p311 = scmp.eq.s32.totalorder %s32, 3
      %p312 = por %p310, %p311
      %p313 = scmp.ne.s32.totalorder %s302, %s303
      %p314 = scmp.eq.s32.totalorder %s32, 0
      %p315 = por %p313, %p314
      %p316 = scmp.ne.s32.totalorder %s302, %s303
      %p317 = scmp.eq.s32.totalorder %s33, 3
      %p318 = por %p316, %p317
      %p320 = scmp.ne.s32.totalorder %s303, %s319
      %p321 = scmp.eq.s32.totalorder %s33, 0
      %p322 = por %p320, %p321
      %p323 = scmp.le.s32.totalorder 1, %s27
      %p324 = scmp.lt.s32.totalorder %s27, 5
      %p325 = pnand %p323, %p324
      %p326 = pneg %p325
      // Predicated region
      $region9: #{tpu_custom_call.1} parent=5 // pred_check
        _
      $region10: #{tpu_custom_call.1} parent=5 // pred_check_branch
        %328 = sbr.rel (%p325) target = $region12
      $region11: #{tpu_custom_call.1} parent=5 // pred_region
        %s329 = ssub.s32 %s27, 1
        // Predicated region
        $region13: #{tpu_custom_call.1} parent=11 // pred_check
          %p330 = pneg %p99
        $region14: #{tpu_custom_call.1} parent=11 // pred_check_branch
          %332 = sbr.rel (%p330) target = $region16
        $region15: #{tpu_custom_call.1} parent=11 // pred_region
          _
        $region16: #{tpu_custom_call.1} parent=11 // pred_fallthru
          _
        // Predicated region
        $region17: #{tpu_custom_call.1} parent=11 // pred_check
          %p333 = pneg %p120
        $region18: #{tpu_custom_call.1} parent=11 // pred_check_branch
          %335 = sbr.rel (%p333) target = $region20
        $region19: #{tpu_custom_call.1} parent=11 // pred_region
          _
        $region20: #{tpu_custom_call.1} parent=11 // pred_fallthru
          _
        // Predicated region
        $region21: #{tpu_custom_call.1} parent=11 // pred_check
          %p336 = pneg %p141
        $region22: #{tpu_custom_call.1} parent=11 // pred_check_branch
          %338 = sbr.rel (%p336) target = $region24
        $region23: #{tpu_custom_call.1} parent=11 // pred_region
          _
        $region24: #{tpu_custom_call.1} parent=11 // pred_fallthru
          _
        // Predicated region
        $region25: #{tpu_custom_call.1} parent=11 // pred_check
          %p339 = pneg %p162
        $region26: #{tpu_custom_call.1} parent=11 // pred_check_branch
          %341 = sbr.rel (%p339) target = $region28
        $region27: #{tpu_custom_call.1} parent=11 // pred_region
          _
        $region28: #{tpu_custom_call.1} parent=11 // pred_fallthru
          _
        // Predicated region
        $region29: #{tpu_custom_call.1} parent=11 // pred_check
          %p342 = pneg %p183
        $region30: #{tpu_custom_call.1} parent=11 // pred_check_branch
          %344 = sbr.rel (%p342) target = $region32
        $region31: #{tpu_custom_call.1} parent=11 // pred_region
          _
        $region32: #{tpu_custom_call.1} parent=11 // pred_fallthru
          _
        // Predicated region
        $region33: #{tpu_custom_call.1} parent=11 // pred_check
          %p345 = pneg %p204
        $region34: #{tpu_custom_call.1} parent=11 // pred_check_branch
          %347 = sbr.rel (%p345) target = $region36
        $region35: #{tpu_custom_call.1} parent=11 // pred_region
          _
        $region36: #{tpu_custom_call.1} parent=11 // pred_fallthru
          _
        // Predicated region
        $region37: #{tpu_custom_call.1} parent=11 // pred_check
          %p348 = pneg %p225
        $region38: #{tpu_custom_call.1} parent=11 // pred_check_branch
          %350 = sbr.rel (%p348) target = $region40
        $region39: #{tpu_custom_call.1} parent=11 // pred_region
          %352 = vsyncadd [#allocation10], 0
          %s354 = sshll.u32 %s7, 4
          %s355 = int_to_ptr.vmem [resolvable:$true] %s354
          %357 = dma.vmem_to_smem %s355, 16, [#allocation11], [#allocation10]
        $region40: #{tpu_custom_call.1} parent=11 // pred_fallthru
          _
      $region12: #{tpu_custom_call.1} parent=5 // pred_fallthru
        _
      %p358 = scmp.lt.s32.totalorder %s27, 4
      // Predicated region
      $region41: #{tpu_custom_call.1} parent=5 // pred_check
        %p359 = pneg %p358
      $region42: #{tpu_custom_call.1} parent=5 // pred_check_branch
        %361 = sbr.rel (%p359) target = $region44
      $region43: #{tpu_custom_call.1} parent=5 // pred_region
        // Predicated region
        $region45: #{tpu_custom_call.1} parent=43 // pred_check
          %p362 = pneg %p72
        $region46: #{tpu_custom_call.1} parent=43 // pred_check_branch
          %364 = sbr.rel (%p362) target = $region48
        $region47: #{tpu_custom_call.1} parent=43 // pred_region
          %s365 = sand.u32 %s62, 1
          %s366 = scalar_lea.sflag [#allocation8], %s365
          %s367 = sand.u32 %s62, 1
          %s368 = smul.addr %s367, 32
          %s369 = scalar_lea.vmem [#allocation7], %s368
          %s370 = ssub.s32 1, %s35
          %s371 = smul.u32 %s36, %s370
          %s372 = smul.u32 2, %s371
          %374 = vsyncadd %s366, 0
          %s375 = smul.addr %s34, 4
          %s376 = sadd.s32 %s372, %s375
          %s377 = smul.addr %s376, 8
          %s378 = scalar_lea.hbm %s0, %s377
          %s379 = sshll.u32 %s378, 4
          %s380 = int_to_ptr.hbm [resolvable:$true] %s379
          %s381 = sshll.u32 %s369, 4
          %s382 = int_to_ptr.vmem [resolvable:$true] %s381
          %387 = dma.hbm_to_vmem [thread:$0]  %s380, 512, %s382, %s366, 256, 256, 16
        $region48: #{tpu_custom_call.1} parent=43 // pred_fallthru
          _
      $region44: #{tpu_custom_call.1} parent=5 // pred_fallthru
        _
      %p388 = scmp.le.s32.totalorder 1, %s27
      %p389 = scmp.lt.s32.totalorder %s27, 5
      %p390 = pnand %p388, %p389
      %p391 = pneg %p390
      // Predicated region
      $region49: #{tpu_custom_call.1} parent=5 // pred_check
        _
      $region50: #{tpu_custom_call.1} parent=5 // pred_check_branch
        %393 = sbr.rel (%p390) target = $region52
      $region51: #{tpu_custom_call.1} parent=5 // pred_region
        %s394 = ssub.s32 %s27, 1
        %s395 = sand.u32 %s65, 1
        %s396 = scalar_lea.sflag [#allocation8], %s395
        %s397 = sand.u32 %s65, 1
        %s398 = smul.addr %s397, 32
        %s399 = scalar_lea.vmem [#allocation7], %s398
        // Predicated region
        $region53: #{tpu_custom_call.1} parent=51 // pred_check
          %p400 = pneg %p78
        $region54: #{tpu_custom_call.1} parent=51 // pred_check_branch
          %402 = sbr.rel (%p400) target = $region56
        $region55: #{tpu_custom_call.1} parent=51 // pred_region
          %404 = dma.done %s396, 512
        $region56: #{tpu_custom_call.1} parent=51 // pred_fallthru
          _
        // Predicated region
        $region57: #{tpu_custom_call.1} parent=51 // pred_check
          %p405 = pneg %p225
        $region58: #{tpu_custom_call.1} parent=51 // pred_check_branch
          %407 = sbr.rel (%p405) target = $region60
        $region59: #{tpu_custom_call.1} parent=51 // pred_region
          %409 = dma.done [#allocation10], 16
        $region60: #{tpu_custom_call.1} parent=51 // pred_fallthru
          _
        %410 = sfence
        %s411 = sand.u32 %s65, 1
        %s412 = scalar_lea.sflag [#allocation8], %s411
        %s413 = sand.u32 %s65, 1
        %s414 = smul.addr %s413, 32
        %s415 = scalar_lea.vmem [#allocation7], %s414
        %p416 = pneg %p78
        %p417 = pneg %p75
        %p418 = pneg %p99
        %p419 = pneg %p96
        %p420 = pneg %p120
        %p421 = pneg %p117
        %p422 = pneg %p141
        %p423 = pneg %p138
        %p424 = pneg %p162
        %p425 = pneg %p159
        %p426 = pneg %p183
        %p427 = pneg %p180
        %p428 = pneg %p204
        %p429 = pneg %p201
        %p430 = pneg %p225
        %p431 = pneg %p222
        %p432 = pneg %p255
        %p433 = pneg %p252
        %s434 = sand.u32 %s242, 1
        %s435 = scalar_lea.sflag [#allocation9], %s434
        %s436 = sand.u32 %s242, 1
        %s437 = smul.addr %s436, 32
        %s438 = scalar_lea.vmem [#allocation12], %s437
        %p439 = pneg %p285
        %p440 = pneg %p282
        %s441 = sand.u32 %s32, 1
        %s442 = scalar_lea.sflag [#allocation14], %s441
        %s443 = sand.u32 %s272, 1
        %s444 = smul.addr %s443, 16
        %s445 = scalar_lea.vmem [#allocation13], %s444
        %p446 = pneg %p315
        %p447 = pneg %p312
        %s448 = sand.u32 %s32, 1
        %s449 = scalar_lea.sflag [#allocation14], %s448
        %s450 = sand.u32 %s302, 1
        %s451 = smul.addr %s450, 16
        %s452 = scalar_lea.vmem [#allocation15], %s451
        %s453 = ssub.s32 1, %s38
        %s454 = smul.u32 %s39, %s453
        %s455 = smul.u32 2, %s454
        %s456 = smul.u32 %s39, %s38
        %s457 = smul.u32 2, %s456
        %s458 = smul.u32 %s39, %s38
        %s459 = smul.u32 2, %s458
        %s460 = smul.u32 %s39, %s38
        %s461 = smul.u32 2, %s460
        %s463 = smul.u32 %s39, 256
        %p464 = scmp.eq.s32.totalorder %s38, 0
        // Predicated region
        $region61: #{tpu_custom_call.1} parent=51 // pred_check
          %p465 = pneg %p464
        $region62: #{tpu_custom_call.1} parent=51 // pred_check_branch
          %467 = sbr.rel (%p465) target = $region64
        $region63: #{tpu_custom_call.1} parent=51 // pred_region
          %v468 = vld [vmem:[%s399] sm:$0xff]
          %v469 = vld [vmem:[%s399 + $0x8] sm:$0xff]
          %v470 = vld [vmem:[%s399 + $0x10] sm:$0xff]
          %v471 = vld [vmem:[%s399 + $0x18] sm:$0xff]
          %v472 = vpack.c.bf16 %v470, %v468
          %v473 = vpack.c.bf16 %v471, %v469
          %p474 = scmp.eq.s32.totalorder %s39, 0
          // Predicated region
          $region65: #{tpu_custom_call.1} parent=63 // pred_check
            %p475 = pneg %p474
          $region66: #{tpu_custom_call.1} parent=63 // pred_check_branch
            %477 = sbr.rel (%p475) target = $region68
          $region67: #{tpu_custom_call.1} parent=63 // pred_region
            %vm478 = vcmask 130048
            %479 = vst.msk [vmem:[#allocation2] sm:$0xff] %vm478, 0.0
            %480 = vst.msk [vmem:[#allocation2 + $0x8] sm:$0xff] %vm478, 0.0
            %vm481 = vcmask 64512
            %482 = vst.msk [vmem:[#allocation3] sm:$0xff] %vm481, 0.0
            %483 = vst.msk [vmem:[#allocation3 + $0x8] sm:$0xff] %vm481, 0.0
            %vm484 = vcmask 7168
            %485 = vst.msk [vmem:[#allocation4] sm:$0xff] %vm484, 0.0
          $region68: #{tpu_custom_call.1} parent=63 // pred_fallthru
            _
          %s486 = sshra.s32 %s463, 7
          %s487 = sand.u32 %s463, 127
          %s488 = smul.addr %s486, 8
          %s489 = scalar_lea.vmem [#allocation6], %s488
          %490 = vst [vmem:[%s489] sm:$0xff] %v468
          %491 = vst [vmem:[%s489 + $0x8] sm:$0xff] %v469
          %492 = vst [vmem:[%s489 + $0x10] sm:$0xff] %v470
          %493 = vst [vmem:[%s489 + $0x18] sm:$0xff] %v471
          %v494 = vld [vmem:[#allocation2] sm:$0xff]
          %v495 = vld [vmem:[#allocation2 + $0x8] sm:$0xff]
          %496 = vmatpush.xpose.msra.mxu0 0.0
          %497 = vmatpush.xpose.msra.mxu0 0.0
          %498 = vmatpush.xpose.msra.mxu0 0.0
          %499 = vmatpush.xpose.msra.mxu0 0.0
          %500 = vmatpush.xpose.msra.mxu0 0.0
          %501 = vmatpush.xpose.msra.mxu0 0.0
          %502 = vmatpush.xpose.msra.mxu0 0.0
          %503 = vmatpush.xpose.msra.mxu0 0.0
          %504 = vmatpush.xpose.msra.mxu0 0.0
          %505 = vmatpush.xpose.msra.mxu0 0.0
          %506 = vmatpush.xpose.msra.mxu0 0.0
          %507 = vmatpush.xpose.msra.mxu0 0.0
          %508 = vmatpush.xpose.msra.mxu0 0.0
          %509 = vmatpush.xpose.msra.mxu0 0.0
          %v510 = vand.u32 %v470, 4294901760
          %511 = vmatpush.xpose.msra.mxu0 %v510
          %v512 = vand.u32 %v468, 4294901760
          %513 = vmatpush.xpose.msra.mxu0 %v512
          %v514 = vand.u32 %v468, 4294901760
          %v515 = vsub.f32 %v468, %v514
          %v516 = vand.u32 %v515, 4294901760
          %v517 = vsub.f32 %v515, %v516
          %v518 = vand.u32 %v517, 4294901760
          %519 = vmatmul.f32.gmra.mxu0 %v518
          %v520 = vpop.f32.mrf.mxu0
          %v521 = vadd.f32 0.0, %v520
          %v522 = vand.u32 %v470, 4294901760
          %v523 = vsub.f32 %v470, %v522
          %v524 = vand.u32 %v523, 4294901760
          %v525 = vsub.f32 %v523, %v524
          %v526 = vand.u32 %v525, 4294901760
          %527 = vmatmul.f32.gmra.mxu0 %v526
          %v528 = vpop.f32.mrf.mxu0
          %v529 = vadd.f32 0.0, %v528
          %530 = vdwg.mxu0
          %531 = vmatpush.xpose.msra.mxu0 0.0
          %532 = vmatpush.xpose.msra.mxu0 0.0
          %533 = vmatpush.xpose.msra.mxu0 0.0
          %534 = vmatpush.xpose.msra.mxu0 0.0
          %535 = vmatpush.xpose.msra.mxu0 0.0
          %536 = vmatpush.xpose.msra.mxu0 0.0
          %537 = vmatpush.xpose.msra.mxu0 0.0
          %538 = vmatpush.xpose.msra.mxu0 0.0
          %539 = vmatpush.xpose.msra.mxu0 0.0
          %540 = vmatpush.xpose.msra.mxu0 0.0
          %541 = vmatpush.xpose.msra.mxu0 0.0
          %542 = vmatpush.xpose.msra.mxu0 0.0
          %543 = vmatpush.xpose.msra.mxu0 0.0
          %544 = vmatpush.xpose.msra.mxu0 0.0
          %v545 = vand.u32 %v470, 4294901760
          %v546 = vsub.f32 %v470, %v545
          %v547 = vand.u32 %v546, 4294901760
          %v548 = vsub.f32 %v546, %v547
          %v549 = vand.u32 %v548, 4294901760
          %550 = vmatpush.xpose.msra.mxu0 %v549
          %v551 = vand.u32 %v468, 4294901760
          %v552 = vsub.f32 %v468, %v551
          %v553 = vand.u32 %v552, 4294901760
          %v554 = vsub.f32 %v552, %v553
          %v555 = vand.u32 %v554, 4294901760
          %556 = vmatpush.xpose.msra.mxu0 %v555
          %v557 = vand.u32 %v468, 4294901760
          %558 = vmatmul.f32.gmra.mxu0 %v557
          %v559 = vpop.f32.mrf.mxu0
          %v560 = vadd.f32 %v521, %v559
          %v561 = vand.u32 %v470, 4294901760
          %562 = vmatmul.f32.gmra.mxu0 %v561
          %v563 = vpop.f32.mrf.mxu0
          %v564 = vadd.f32 %v529, %v563
          %565 = vdwg.mxu0
          %566 = vmatpush.xpose.msra.mxu0 0.0
          %567 = vmatpush.xpose.msra.mxu0 0.0
          %568 = vmatpush.xpose.msra.mxu0 0.0
          %569 = vmatpush.xpose.msra.mxu0 0.0
          %570 = vmatpush.xpose.msra.mxu0 0.0
          %571 = vmatpush.xpose.msra.mxu0 0.0
          %572 = vmatpush.xpose.msra.mxu0 0.0
          %573 = vmatpush.xpose.msra.mxu0 0.0
          %574 = vmatpush.xpose.msra.mxu0 0.0
          %575 = vmatpush.xpose.msra.mxu0 0.0
          %576 = vmatpush.xpose.msra.mxu0 0.0
          %577 = vmatpush.xpose.msra.mxu0 0.0
          %578 = vmatpush.xpose.msra.mxu0 0.0
          %579 = vmatpush.xpose.msra.mxu0 0.0
          %v580 = vand.u32 %v470, 4294901760
          %v581 = vsub.f32 %v470, %v580
          %582 = vmatpush.xpose.msra.mxu0 %v581
          %v583 = vand.u32 %v468, 4294901760
          %v584 = vsub.f32 %v468, %v583
          %585 = vmatpush.xpose.msra.mxu0 %v584
          %v586 = vand.u32 %v468, 4294901760
          %v587 = vsub.f32 %v468, %v586
          %588 = vmatmul.f32.gmra.mxu0 %v587
          %v589 = vpop.f32.mrf.mxu0
          %v590 = vadd.f32 %v560, %v589
          %v591 = vand.u32 %v470, 4294901760
          %v592 = vsub.f32 %v470, %v591
          %593 = vmatmul.f32.gmra.mxu0 %v592
          %v594 = vpop.f32.mrf.mxu0
          %v595 = vadd.f32 %v564, %v594
          %596 = vdwg.mxu0
          %597 = vmatpush.xpose.msra.mxu0 0.0
          %598 = vmatpush.xpose.msra.mxu0 0.0
          %599 = vmatpush.xpose.msra.mxu0 0.0
          %600 = vmatpush.xpose.msra.mxu0 0.0
          %601 = vmatpush.xpose.msra.mxu0 0.0
          %602 = vmatpush.xpose.msra.mxu0 0.0
          %603 = vmatpush.xpose.msra.mxu0 0.0
          %604 = vmatpush.xpose.msra.mxu0 0.0
          %605 = vmatpush.xpose.msra.mxu0 0.0
          %606 = vmatpush.xpose.msra.mxu0 0.0
          %607 = vmatpush.xpose.msra.mxu0 0.0
          %608 = vmatpush.xpose.msra.mxu0 0.0
          %609 = vmatpush.xpose.msra.mxu0 0.0
          %610 = vmatpush.xpose.msra.mxu0 0.0
          %v611 = vand.u32 %v470, 4294901760
          %612 = vmatpush.xpose.msra.mxu0 %v611
          %v613 = vand.u32 %v468, 4294901760
          %614 = vmatpush.xpose.msra.mxu0 %v613
          %v615 = vand.u32 %v468, 4294901760
          %v616 = vsub.f32 %v468, %v615
          %v617 = vand.u32 %v616, 4294901760
          %618 = vmatmul.f32.gmra.mxu0 %v617
          %v619 = vpop.f32.mrf.mxu0
          %v620 = vadd.f32 %v590, %v619
          %v621 = vand.u32 %v470, 4294901760
          %v622 = vsub.f32 %v470, %v621
          %v623 = vand.u32 %v622, 4294901760
          %624 = vmatmul.f32.gmra.mxu0 %v623
          %v625 = vpop.f32.mrf.mxu0
          %v626 = vadd.f32 %v595, %v625
          %627 = vdwg.mxu0
          %628 = vmatpush.xpose.msra.mxu0 0.0
          %629 = vmatpush.xpose.msra.mxu0 0.0
          %630 = vmatpush.xpose.msra.mxu0 0.0
          %631 = vmatpush.xpose.msra.mxu0 0.0
          %632 = vmatpush.xpose.msra.mxu0 0.0
          %633 = vmatpush.xpose.msra.mxu0 0.0
          %634 = vmatpush.xpose.msra.mxu0 0.0
          %635 = vmatpush.xpose.msra.mxu0 0.0
          %636 = vmatpush.xpose.msra.mxu0 0.0
          %637 = vmatpush.xpose.msra.mxu0 0.0
          %638 = vmatpush.xpose.msra.mxu0 0.0
          %639 = vmatpush.xpose.msra.mxu0 0.0
          %640 = vmatpush.xpose.msra.mxu0 0.0
          %641 = vmatpush.xpose.msra.mxu0 0.0
          %v642 = vand.u32 %v470, 4294901760
          %v643 = vsub.f32 %v470, %v642
          %v644 = vand.u32 %v643, 4294901760
          %645 = vmatpush.xpose.msra.mxu0 %v644
          %v646 = vand.u32 %v468, 4294901760
          %v647 = vsub.f32 %v468, %v646
          %v648 = vand.u32 %v647, 4294901760
          %649 = vmatpush.xpose.msra.mxu0 %v648
          %v650 = vand.u32 %v468, 4294901760
          %651 = vmatmul.f32.gmra.mxu0 %v650
          %v652 = vpop.f32.mrf.mxu0
          %v653 = vadd.f32 %v620, %v652
          %v654 = vand.u32 %v470, 4294901760
          %655 = vmatmul.f32.gmra.mxu0 %v654
          %v656 = vpop.f32.mrf.mxu0
          %v657 = vadd.f32 %v626, %v656
          %658 = vdwg.mxu0
          %659 = vmatpush.xpose.msra.mxu0 0.0
          %660 = vmatpush.xpose.msra.mxu0 0.0
          %661 = vmatpush.xpose.msra.mxu0 0.0
          %662 = vmatpush.xpose.msra.mxu0 0.0
          %663 = vmatpush.xpose.msra.mxu0 0.0
          %664 = vmatpush.xpose.msra.mxu0 0.0
          %665 = vmatpush.xpose.msra.mxu0 0.0
          %666 = vmatpush.xpose.msra.mxu0 0.0
          %667 = vmatpush.xpose.msra.mxu0 0.0
          %668 = vmatpush.xpose.msra.mxu0 0.0
          %669 = vmatpush.xpose.msra.mxu0 0.0
          %670 = vmatpush.xpose.msra.mxu0 0.0
          %671 = vmatpush.xpose.msra.mxu0 0.0
          %672 = vmatpush.xpose.msra.mxu0 0.0
          %v673 = vand.u32 %v470, 4294901760
          %674 = vmatpush.xpose.msra.mxu0 %v673
          %v675 = vand.u32 %v468, 4294901760
          %676 = vmatpush.xpose.msra.mxu0 %v675
          %v677 = vand.u32 %v468, 4294901760
          %678 = vmatmul.f32.gmra.mxu0 %v677
          %v679 = vpop.f32.mrf.mxu0
          %v680 = vadd.f32 %v653, %v679
          %v681 = vand.u32 %v470, 4294901760
          %682 = vmatmul.f32.gmra.mxu0 %v681
          %v683 = vpop.f32.mrf.mxu0
          %v684 = vadd.f32 %v657, %v683
          %685 = vdwg.mxu0
          %686 = vmatpush.xpose.msra.mxu0 0.0
          %687 = vmatpush.xpose.msra.mxu0 0.0
          %688 = vmatpush.xpose.msra.mxu0 0.0
          %689 = vmatpush.xpose.msra.mxu0 0.0
          %690 = vmatpush.xpose.msra.mxu0 0.0
          %691 = vmatpush.xpose.msra.mxu0 0.0
          %692 = vmatpush.xpose.msra.mxu0 0.0
          %693 = vmatpush.xpose.msra.mxu0 0.0
          %694 = vmatpush.xpose.msra.mxu0 0.0
          %695 = vmatpush.xpose.msra.mxu0 0.0
          %696 = vmatpush.xpose.msra.mxu0 0.0
          %697 = vmatpush.xpose.msra.mxu0 0.0
          %698 = vmatpush.xpose.msra.mxu0 0.0
          %699 = vmatpush.xpose.msra.mxu0 0.0
          %v700 = vand.u32 %v471, 4294901760
          %701 = vmatpush.xpose.msra.mxu0 %v700
          %v702 = vand.u32 %v469, 4294901760
          %703 = vmatpush.xpose.msra.mxu0 %v702
          %v704 = vand.u32 %v469, 4294901760
          %v705 = vsub.f32 %v469, %v704
          %v706 = vand.u32 %v705, 4294901760
          %v707 = vsub.f32 %v705, %v706
          %v708 = vand.u32 %v707, 4294901760
          %709 = vmatmul.f32.gmra.mxu0 %v708
          %v710 = vpop.f32.mrf.mxu0
          %v711 = vadd.f32 %v680, %v710
          %v712 = vand.u32 %v471, 4294901760
          %v713 = vsub.f32 %v471, %v712
          %v714 = vand.u32 %v713, 4294901760
          %v715 = vsub.f32 %v713, %v714
          %v716 = vand.u32 %v715, 4294901760
          %717 = vmatmul.f32.gmra.mxu0 %v716
          %v718 = vpop.f32.mrf.mxu0
          %v719 = vadd.f32 %v684, %v718
          %720 = vdwg.mxu0
          %721 = vmatpush.xpose.msra.mxu0 0.0
          %722 = vmatpush.xpose.msra.mxu0 0.0
          %723 = vmatpush.xpose.msra.mxu0 0.0
          %724 = vmatpush.xpose.msra.mxu0 0.0
          %725 = vmatpush.xpose.msra.mxu0 0.0
          %726 = vmatpush.xpose.msra.mxu0 0.0
          %727 = vmatpush.xpose.msra.mxu0 0.0
          %728 = vmatpush.xpose.msra.mxu0 0.0
          %729 = vmatpush.xpose.msra.mxu0 0.0
          %730 = vmatpush.xpose.msra.mxu0 0.0
          %731 = vmatpush.xpose.msra.mxu0 0.0
          %732 = vmatpush.xpose.msra.mxu0 0.0
          %733 = vmatpush.xpose.msra.mxu0 0.0
          %734 = vmatpush.xpose.msra.mxu0 0.0
          %v735 = vand.u32 %v471, 4294901760
          %v736 = vsub.f32 %v471, %v735
          %v737 = vand.u32 %v736, 4294901760
          %v738 = vsub.f32 %v736, %v737
          %v739 = vand.u32 %v738, 4294901760
          %740 = vmatpush.xpose.msra.mxu0 %v739
          %v741 = vand.u32 %v469, 4294901760
          %v742 = vsub.f32 %v469, %v741
          %v743 = vand.u32 %v742, 4294901760
          %v744 = vsub.f32 %v742, %v743
          %v745 = vand.u32 %v744, 4294901760
          %746 = vmatpush.xpose.msra.mxu0 %v745
          %v747 = vand.u32 %v469, 4294901760
          %748 = vmatmul.f32.gmra.mxu0 %v747
          %v749 = vpop.f32.mrf.mxu0
          %v750 = vadd.f32 %v711, %v749
          %v751 = vand.u32 %v471, 4294901760
          %752 = vmatmul.f32.gmra.mxu0 %v751
          %v753 = vpop.f32.mrf.mxu0
          %v754 = vadd.f32 %v719, %v753
          %755 = vdwg.mxu0
          %756 = vmatpush.xpose.msra.mxu0 0.0
          %757 = vmatpush.xpose.msra.mxu0 0.0
          %758 = vmatpush.xpose.msra.mxu0 0.0
          %759 = vmatpush.xpose.msra.mxu0 0.0
          %760 = vmatpush.xpose.msra.mxu0 0.0
          %761 = vmatpush.xpose.msra.mxu0 0.0
          %762 = vmatpush.xpose.msra.mxu0 0.0
          %763 = vmatpush.xpose.msra.mxu0 0.0
          %764 = vmatpush.xpose.msra.mxu0 0.0
          %765 = vmatpush.xpose.msra.mxu0 0.0
          %766 = vmatpush.xpose.msra.mxu0 0.0
          %767 = vmatpush.xpose.msra.mxu0 0.0
          %768 = vmatpush.xpose.msra.mxu0 0.0
          %769 = vmatpush.xpose.msra.mxu0 0.0
          %v770 = vand.u32 %v471, 4294901760
          %v771 = vsub.f32 %v471, %v770
          %772 = vmatpush.xpose.msra.mxu0 %v771
          %v773 = vand.u32 %v469, 4294901760
          %v774 = vsub.f32 %v469, %v773
          %775 = vmatpush.xpose.msra.mxu0 %v774
          %v776 = vand.u32 %v469, 4294901760
          %v777 = vsub.f32 %v469, %v776
          %778 = vmatmul.f32.gmra.mxu0 %v777
          %v779 = vpop.f32.mrf.mxu0
          %v780 = vadd.f32 %v750, %v779
          %v781 = vand.u32 %v471, 4294901760
          %v782 = vsub.f32 %v471, %v781
          %783 = vmatmul.f32.gmra.mxu0 %v782
          %v784 = vpop.f32.mrf.mxu0
          %v785 = vadd.f32 %v754, %v784
          %786 = vdwg.mxu0
          %787 = vmatpush.xpose.msra.mxu0 0.0
          %788 = vmatpush.xpose.msra.mxu0 0.0
          %789 = vmatpush.xpose.msra.mxu0 0.0
          %790 = vmatpush.xpose.msra.mxu0 0.0
          %791 = vmatpush.xpose.msra.mxu0 0.0
          %792 = vmatpush.xpose.msra.mxu0 0.0
          %793 = vmatpush.xpose.msra.mxu0 0.0
          %794 = vmatpush.xpose.msra.mxu0 0.0
          %795 = vmatpush.xpose.msra.mxu0 0.0
          %796 = vmatpush.xpose.msra.mxu0 0.0
          %797 = vmatpush.xpose.msra.mxu0 0.0
          %798 = vmatpush.xpose.msra.mxu0 0.0
          %799 = vmatpush.xpose.msra.mxu0 0.0
          %800 = vmatpush.xpose.msra.mxu0 0.0
          %v801 = vand.u32 %v471, 4294901760
          %802 = vmatpush.xpose.msra.mxu0 %v801
          %v803 = vand.u32 %v469, 4294901760
          %804 = vmatpush.xpose.msra.mxu0 %v803
          %v805 = vand.u32 %v469, 4294901760
          %v806 = vsub.f32 %v469, %v805
          %v807 = vand.u32 %v806, 4294901760
          %808 = vmatmul.f32.gmra.mxu0 %v807
          %v809 = vpop.f32.mrf.mxu0
          %v810 = vadd.f32 %v780, %v809
          %v811 = vand.u32 %v471, 4294901760
          %v812 = vsub.f32 %v471, %v811
          %v813 = vand.u32 %v812, 4294901760
          %814 = vmatmul.f32.gmra.mxu0 %v813
          %v815 = vpop.f32.mrf.mxu0
          %v816 = vadd.f32 %v785, %v815
          %817 = vdwg.mxu0
          %818 = vmatpush.xpose.msra.mxu0 0.0
          %819 = vmatpush.xpose.msra.mxu0 0.0
          %820 = vmatpush.xpose.msra.mxu0 0.0
          %821 = vmatpush.xpose.msra.mxu0 0.0
          %822 = vmatpush.xpose.msra.mxu0 0.0
          %823 = vmatpush.xpose.msra.mxu0 0.0
          %824 = vmatpush.xpose.msra.mxu0 0.0
          %825 = vmatpush.xpose.msra.mxu0 0.0
          %826 = vmatpush.xpose.msra.mxu0 0.0
          %827 = vmatpush.xpose.msra.mxu0 0.0
          %828 = vmatpush.xpose.msra.mxu0 0.0
          %829 = vmatpush.xpose.msra.mxu0 0.0
          %830 = vmatpush.xpose.msra.mxu0 0.0
          %831 = vmatpush.xpose.msra.mxu0 0.0
          %v832 = vand.u32 %v471, 4294901760
          %v833 = vsub.f32 %v471, %v832
          %v834 = vand.u32 %v833, 4294901760
          %835 = vmatpush.xpose.msra.mxu0 %v834
          %v836 = vand.u32 %v469, 4294901760
          %v837 = vsub.f32 %v469, %v836
          %v838 = vand.u32 %v837, 4294901760
          %839 = vmatpush.xpose.msra.mxu0 %v838
          %v840 = vand.u32 %v469, 4294901760
          %841 = vmatmul.f32.gmra.mxu0 %v840
          %v842 = vpop.f32.mrf.mxu0
          %v843 = vadd.f32 %v810, %v842
          %v844 = vand.u32 %v471, 4294901760
          %845 = vmatmul.f32.gmra.mxu0 %v844
          %v846 = vpop.f32.mrf.mxu0
          %v847 = vadd.f32 %v816, %v846
          %848 = vdwg.mxu0
          %849 = vmatpush.xpose.msra.mxu0 0.0
          %850 = vmatpush.xpose.msra.mxu0 0.0
          %851 = vmatpush.xpose.msra.mxu0 0.0
          %852 = vmatpush.xpose.msra.mxu0 0.0
          %853 = vmatpush.xpose.msra.mxu0 0.0
          %854 = vmatpush.xpose.msra.mxu0 0.0
          %855 = vmatpush.xpose.msra.mxu0 0.0
          %856 = vmatpush.xpose.msra.mxu0 0.0
          %857 = vmatpush.xpose.msra.mxu0 0.0
          %858 = vmatpush.xpose.msra.mxu0 0.0
          %859 = vmatpush.xpose.msra.mxu0 0.0
          %860 = vmatpush.xpose.msra.mxu0 0.0
          %861 = vmatpush.xpose.msra.mxu0 0.0
          %862 = vmatpush.xpose.msra.mxu0 0.0
          %v863 = vand.u32 %v471, 4294901760
          %864 = vmatpush.xpose.msra.mxu0 %v863
          %v865 = vand.u32 %v469, 4294901760
          %866 = vmatpush.xpose.msra.mxu0 %v865
          %v867 = vand.u32 %v469, 4294901760
          %868 = vmatmul.f32.gmra.mxu0 %v867
          %v869 = vpop.f32.mrf.mxu0
          %v870 = vadd.f32 %v843, %v869
          %v871 = vand.u32 %v471, 4294901760
          %872 = vmatmul.f32.gmra.mxu0 %v871
          %v873 = vpop.f32.mrf.mxu0
          %v874 = vadd.f32 %v847, %v873
          %875 = vdwg.mxu0
          %v876 = vadd.f32 %v494, %v870
          %v877 = vadd.f32 %v495, %v874
          %vm878 = vcmask 130048
          %879 = vst.msk [vmem:[#allocation2] sm:$0xff] %vm878, %v876
          %880 = vst.msk [vmem:[#allocation2 + $0x8] sm:$0xff] %vm878, %v877
          %v881 = vld [vmem:[%s3] sm:$0xff]
          %v882 = vpack.c.bf16 %v881, %v881
          %v883 = vld [vmem:[%s4] sm:$0xff]
          %885 = vset.pattern.permute.xlu0 0
          %886 = vperm.xlu0 %885, %v883
          %v887 = vpop.permute.xlu0 %886
          %v890 = vsel %vm878, %v882, 0
          %892 = vmatpush.bf16.msra.mxu0 0
          %893 = vmatpush.bf16.msra.mxu0 0
          %894 = vmatpush.bf16.msra.mxu0 0
          %895 = vmatpush.bf16.msra.mxu0 0
          %896 = vmatpush.bf16.msra.mxu0 0
          %897 = vmatpush.bf16.msra.mxu0 0
          %898 = vmatpush.bf16.msra.mxu0 0
          %899 = vmatpush.bf16.msra.mxu0 %v472
          %900 = vmatmul.bf16.gmra.mxu0 %v890
          %v901 = vpop.f32.mrf.mxu0
          %v902 = vadd.f32 %v887, %v901
          %v903 = vpop.f32.mrf.mxu0
          %904 = vdwg.mxu0
          %905 = vmatpush.bf16.msra.mxu0 0
          %906 = vmatpush.bf16.msra.mxu0 0
          %907 = vmatpush.bf16.msra.mxu0 0
          %908 = vmatpush.bf16.msra.mxu0 0
          %909 = vmatpush.bf16.msra.mxu0 0
          %910 = vmatpush.bf16.msra.mxu0 0
          %911 = vmatpush.bf16.msra.mxu0 0
          %912 = vmatpush.bf16.msra.mxu0 %v473
          %913 = vmatmul.bf16.gmra.mxu0 %v890
          %v914 = vpop.f32.mrf.mxu0
          %v915 = vadd.f32 %v887, %v914
          %v916 = vpop.f32.mrf.mxu0
          %917 = vdwg.mxu0
          %v918 = vmax.f32 %v902, 0.0
          %v919 = vmax.f32 %v915, 0.0
          %v920 = vand.u32 2147483647, %v902
          %v921 = vand.u32 2147483647, %v915
          %v922 = vsub.f32 0.0, %v920
          %v923 = vsub.f32 0.0, %v921
          %v924 = vmul.f32 %v922, 1.442695
          %v925 = vpow.pop %v924
          %v926 = vmul.f32 %v923, 1.442695
          %v927 = vpow.pop %v926
          %v928 = vadd.f32 %v925, 1.0
          %v929 = vadd.f32 %v927, 1.0
          %v930 = vlog2.pop %v928
          %v931 = vmul.f32 %v930, 0.6931472
          %v932 = vlog2.pop %v929
          %v933 = vmul.f32 %v932, 0.6931472
          %v934 = vadd.f32 %v918, %v931
          %v935 = vadd.f32 %v919, %v933
          %v936 = vld [vmem:[%s5] sm:$0xff]
          %v937 = vld [vmem:[%s5 + $0x8] sm:$0xff]
          %v938 = vpack.c.bf16 %v937, %v936
          %v939 = vld [vmem:[%s6] sm:$0xff]
          %v940 = vld [vmem:[%s6 + $0x8] sm:$0xff]
          %942 = vset.pattern.permute.xlu0 0
          %943 = vperm.xlu0 %942, %v939
          %v944 = vpop.permute.xlu0 %943
          %947 = vset.pattern.permute.xlu0 0
          %948 = vperm.xlu0 %947, %v940
          %v949 = vpop.permute.xlu0 %948
          %v952 = vsel %vm878, %v938, 0
          %954 = vmatpush.bf16.msra.mxu0 0
          %955 = vmatpush.bf16.msra.mxu0 0
          %956 = vmatpush.bf16.msra.mxu0 0
          %957 = vmatpush.bf16.msra.mxu0 0
          %958 = vmatpush.bf16.msra.mxu0 0
          %959 = vmatpush.bf16.msra.mxu0 0
          %960 = vmatpush.bf16.msra.mxu0 0
          %961 = vmatpush.bf16.msra.mxu0 %v472
          %962 = vmatmul.bf16.gmra.mxu0 %v952
          %v963 = vpop.f32.mrf.mxu0
          %v964 = vadd.f32 %v944, %v963
          %v965 = vpop.f32.mrf.mxu0
          %v966 = vadd.f32 %v949, %v965
          %967 = vdwg.mxu0
          %968 = vmatpush.bf16.msra.mxu0 0
          %969 = vmatpush.bf16.msra.mxu0 0
          %970 = vmatpush.bf16.msra.mxu0 0
          %971 = vmatpush.bf16.msra.mxu0 0
          %972 = vmatpush.bf16.msra.mxu0 0
          %973 = vmatpush.bf16.msra.mxu0 0
          %974 = vmatpush.bf16.msra.mxu0 0
          %975 = vmatpush.bf16.msra.mxu0 %v473
          %976 = vmatmul.bf16.gmra.mxu0 %v952
          %v977 = vpop.f32.mrf.mxu0
          %v978 = vadd.f32 %v944, %v977
          %v979 = vpop.f32.mrf.mxu0
          %v980 = vadd.f32 %v949, %v979
          %981 = vdwg.mxu0
          %v982 = vld [vmem:[#allocation3] sm:$0xff]
          %v983 = vld [vmem:[#allocation3 + $0x8] sm:$0xff]
          %v984 = vpack.c.bf16 %v966, %v964
          %v985 = vpack.c.bf16 %v980, %v978
          %v986 = vpack.c.bf16 %v934, %v934
          %v987 = vpack.c.bf16 %v935, %v935
          %988 = vmatpush.bf16.xpose.msra.mxu0 0
          %989 = vmatpush.bf16.xpose.msra.mxu0 0
          %990 = vmatpush.bf16.xpose.msra.mxu0 0
          %991 = vmatpush.bf16.xpose.msra.mxu0 0
          %992 = vmatpush.bf16.xpose.msra.mxu0 0
          %993 = vmatpush.bf16.xpose.msra.mxu0 0
          %994 = vmatpush.bf16.xpose.msra.mxu0 0
          %995 = vmatpush.bf16.xpose.msra.mxu0 %v986
          %996 = vmatmul.bf16.gmra.mxu0 %v984
          %v997 = vpop.f32.mrf.mxu0
          %v998 = vadd.f32 0.0, %v997
          %v999 = vpop.f32.mrf.mxu0
          %v1000 = vadd.f32 0.0, %v999
          %1001 = vdwg.mxu0
          %1002 = vmatpush.bf16.xpose.msra.mxu0 0
          %1003 = vmatpush.bf16.xpose.msra.mxu0 0
          %1004 = vmatpush.bf16.xpose.msra.mxu0 0
          %1005 = vmatpush.bf16.xpose.msra.mxu0 0
          %1006 = vmatpush.bf16.xpose.msra.mxu0 0
          %1007 = vmatpush.bf16.xpose.msra.mxu0 0
          %1008 = vmatpush.bf16.xpose.msra.mxu0 0
          %1009 = vmatpush.bf16.xpose.msra.mxu0 %v987
          %1010 = vmatmul.bf16.gmra.mxu0 %v985
          %v1011 = vpop.f32.mrf.mxu0
          %v1012 = vadd.f32 %v998, %v1011
          %v1013 = vpop.f32.mrf.mxu0
          %v1014 = vadd.f32 %v1000, %v1013
          %1015 = vdwg.mxu0
          %v1016 = vadd.f32 %v982, %v1012
          %v1017 = vadd.f32 %v983, %v1014
          %vm1018 = vcmask 64512
          %1019 = vst.msk [vmem:[#allocation3] sm:$0xff] %vm1018, %v1016
          %1020 = vst.msk [vmem:[#allocation3 + $0x8] sm:$0xff] %vm1018, %v1017
          %v1021 = vld [vmem:[#allocation4] sm:$0xff]
          %v1022 = vadd.f32 %v934, %v935
          %1023 = vadd.xlane.f32.xlu0 %v1022
          %v1024 = vpop.xlane.xlu0 %1023
          %v1025 = vadd.f32 %v1021, %v1024
          %vm1026 = vcmask 7168
          %1027 = vst.msk [vmem:[#allocation4] sm:$0xff] %vm1026, %v1025
          // Predicated region
          $region69: #{tpu_custom_call.1} parent=63 // pred_check
            %p1028 = pneg %p474
          $region70: #{tpu_custom_call.1} parent=63 // pred_check_branch
            %1030 = sbr.rel (%p1028) target = $region72
          $region71: #{tpu_custom_call.1} parent=63 // pred_region
            %v1031 = vld [vmem:[#allocation2] sm:$0xff]
            %v1032 = vld [vmem:[#allocation2 + $0x8] sm:$0xff]
            %v1033 = vsel %vm878, %v1031, inf
            %1034 = vmin.xlane.f32.xlu0 %v1033
            %v1035 = vpop.xlane.xlu0 %1034
            %v1036 = vsel %vm878, %v1032, inf
            %1037 = vmin.xlane.f32.xlu0 %v1036
            %v1038 = vpop.xlane.xlu0 %1037
            %v1039 = vsub.f32 %v1035, %v1031
            %v1040 = vsub.f32 %v1038, %v1032
            %v1041 = vmul.f32 %v1039, 1.442695
            %v1042 = vpow.pop %v1041
            %v1043 = vmul.f32 %v1040, 1.442695
            %v1044 = vpow.pop %v1043
            %v1045 = vsel %vm878, %v1042, 0.0
            %1046 = vadd.xlane.f32.xlu0 %v1045
            %v1047 = vpop.xlane.xlu0 %1046
            %v1048 = vsel %vm878, %v1044, 0.0
            %1049 = vadd.xlane.f32.xlu0 %v1048
            %v1050 = vpop.xlane.xlu0 %1049
            %v1051 = vrcp.pop %v1047
            %v1052 = vrcp.pop %v1050
            %v1053 = vmul.f32 %v1047, %v1051
            %v1054 = vmul.f32 %v1050, %v1052
            %v1055 = vsub.f32 2.0, %v1053
            %v1056 = vsub.f32 2.0, %v1054
            %v1057 = vmul.f32 %v1051, %v1055
            %v1058 = vmul.f32 %v1052, %v1056
            %v1059 = vmul.f32 %v1042, %v1057
            %v1060 = vmul.f32 %v1044, %v1058
            %1061 = vst.msk [vmem:[#allocation5] sm:$0xff] %vm878, %v1059
            %1062 = vst.msk [vmem:[#allocation5 + $0x8] sm:$0xff] %vm878, %v1060
            %v1063 = vld [vmem:[#allocation4] sm:$0xff]
            %v1064 = vadd.f32 %v1063, 1e-06
            %1065 = vst.msk [vmem:[#allocation4] sm:$0xff] %vm1026, %v1064
          $region72: #{tpu_custom_call.1} parent=63 // pred_fallthru
            _
        $region64: #{tpu_custom_call.1} parent=51 // pred_fallthru
          _
        %p1066 = scmp.eq.s32.totalorder %s38, 1
        // Predicated region
        $region73: #{tpu_custom_call.1} parent=51 // pred_check
          %p1067 = pneg %p1066
        $region74: #{tpu_custom_call.1} parent=51 // pred_check_branch
          %1069 = sbr.rel (%p1067) target = $region76
        $region75: #{tpu_custom_call.1} parent=51 // pred_region
          %s1070 = sshra.s32 %s463, 7
          %s1071 = sand.u32 %s463, 127
          %s1072 = smul.addr %s1070, 8
          %s1073 = scalar_lea.vmem [#allocation6], %s1072
          %v1074 = vld [vmem:[%s1073] sm:$0xff]
          %v1075 = vld [vmem:[%s1073 + $0x8] sm:$0xff]
          %v1076 = vld [vmem:[%s1073 + $0x10] sm:$0xff]
          %v1077 = vld [vmem:[%s1073 + $0x18] sm:$0xff]
          %v1078 = vpack.c.bf16 %v1076, %v1074
          %v1079 = vpack.c.bf16 %v1077, %v1075
          %v1080 = vld [vmem:[#allocation5] sm:$0xff]
          %v1081 = vld [vmem:[#allocation5 + $0x8] sm:$0xff]
          %v1082 = vpack.c.bf16 %v1081, %v1080
          %vm1083 = vcmask 130048
          %v1085 = vsel %vm1083, %v1082, 0
          %1087 = vmatpush.bf16.msra.mxu0 0
          %1088 = vmatpush.bf16.msra.mxu0 0
          %1089 = vmatpush.bf16.msra.mxu0 0
          %1090 = vmatpush.bf16.msra.mxu0 0
          %1091 = vmatpush.bf16.msra.mxu0 0
          %1092 = vmatpush.bf16.msra.mxu0 0
          %1093 = vmatpush.bf16.msra.mxu0 0
          %1094 = vmatpush.bf16.msra.mxu0 %v1078
          %1095 = vmatmul.bf16.gmra.mxu0 %v1085
          %v1096 = vpop.f32.mrf.mxu0
          %v1097 = vadd.f32 0.0, %v1096
          %v1098 = vpop.f32.mrf.mxu0
          %v1099 = vadd.f32 0.0, %v1098
          %1100 = vdwg.mxu0
          %1101 = vmatpush.bf16.msra.mxu0 0
          %1102 = vmatpush.bf16.msra.mxu0 0
          %1103 = vmatpush.bf16.msra.mxu0 0
          %1104 = vmatpush.bf16.msra.mxu0 0
          %1105 = vmatpush.bf16.msra.mxu0 0
          %1106 = vmatpush.bf16.msra.mxu0 0
          %1107 = vmatpush.bf16.msra.mxu0 0
          %1108 = vmatpush.bf16.msra.mxu0 %v1079
          %1109 = vmatmul.bf16.gmra.mxu0 %v1085
          %v1110 = vpop.f32.mrf.mxu0
          %v1111 = vadd.f32 0.0, %v1110
          %v1112 = vpop.f32.mrf.mxu0
          %v1113 = vadd.f32 0.0, %v1112
          %1114 = vdwg.mxu0
          %v1115 = vld [vmem:[%s1] sm:$0xff]
          %v1116 = vpack.c.bf16 %v1115, %v1115
          %v1117 = vld [vmem:[%s2] sm:$0xff]
          %1119 = vset.pattern.permute.xlu0 0
          %1120 = vperm.xlu0 %1119, %v1117
          %v1121 = vpop.permute.xlu0 %1120
          %v1124 = vsel %vm1083, %v1116, 0
          %1126 = vmatpush.bf16.msra.mxu0 0
          %1127 = vmatpush.bf16.msra.mxu0 0
          %1128 = vmatpush.bf16.msra.mxu0 0
          %1129 = vmatpush.bf16.msra.mxu0 0
          %1130 = vmatpush.bf16.msra.mxu0 0
          %1131 = vmatpush.bf16.msra.mxu0 0
          %1132 = vmatpush.bf16.msra.mxu0 0
          %1133 = vmatpush.bf16.msra.mxu0 %v1078
          %1134 = vmatmul.bf16.gmra.mxu0 %v1124
          %v1135 = vpop.f32.mrf.mxu0
          %v1136 = vadd.f32 %v1121, %v1135
          %v1137 = vpop.f32.mrf.mxu0
          %1138 = vdwg.mxu0
          %1139 = vmatpush.bf16.msra.mxu0 0
          %1140 = vmatpush.bf16.msra.mxu0 0
          %1141 = vmatpush.bf16.msra.mxu0 0
          %1142 = vmatpush.bf16.msra.mxu0 0
          %1143 = vmatpush.bf16.msra.mxu0 0
          %1144 = vmatpush.bf16.msra.mxu0 0
          %1145 = vmatpush.bf16.msra.mxu0 0
          %1146 = vmatpush.bf16.msra.mxu0 %v1079
          %1147 = vmatmul.bf16.gmra.mxu0 %v1124
          %v1148 = vpop.f32.mrf.mxu0
          %v1149 = vadd.f32 %v1121, %v1148
          %v1150 = vpop.f32.mrf.mxu0
          %1151 = vdwg.mxu0
          %v1152 = vmax.f32 %v1136, 0.0
          %v1153 = vmax.f32 %v1149, 0.0
          %v1154 = vand.u32 2147483647, %v1136
          %v1155 = vand.u32 2147483647, %v1149
          %v1156 = vsub.f32 0.0, %v1154
          %v1157 = vsub.f32 0.0, %v1155
          %v1158 = vmul.f32 %v1156, 1.442695
          %v1159 = vpow.pop %v1158
          %v1160 = vmul.f32 %v1157, 1.442695
          %v1161 = vpow.pop %v1160
          %v1162 = vadd.f32 %v1159, 1.0
          %v1163 = vadd.f32 %v1161, 1.0
          %v1164 = vlog2.pop %v1162
          %v1165 = vmul.f32 %v1164, 0.6931472
          %v1166 = vlog2.pop %v1163
          %v1167 = vmul.f32 %v1166, 0.6931472
          %v1168 = vadd.f32 %v1152, %v1165
          %v1169 = vadd.f32 %v1153, %v1167
          %v1170 = vld [vmem:[#allocation4] sm:$0xff]
          %1172 = vset.pattern.permute.xlu0 0
          %1173 = vperm.xlu0 %1172, %v1170
          %v1174 = vpop.permute.xlu0 %1173
          %v1176 = vmul.f32 %v1168, %v1174
          %v1177 = vmul.f32 %v1169, %v1174
          %v1178 = vrot.slane %v1176, 4
          %v1179 = vadd.f32 %v1176, %v1178
          %v1180 = vrot.slane %v1179, 2
          %v1181 = vadd.f32 %v1179, %v1180
          %v1182 = vrot.slane %v1181, 1
          %v1183 = vadd.f32 %v1181, %v1182
          %v1184 = vrot.slane %v1177, 4
          %v1185 = vadd.f32 %v1177, %v1184
          %v1186 = vrot.slane %v1185, 2
          %v1187 = vadd.f32 %v1185, %v1186
          %v1188 = vrot.slane %v1187, 1
          %v1189 = vadd.f32 %v1187, %v1188
          %v1190 = vrcp.pop %v1183
          %v1191 = vrcp.pop %v1189
          %v1192 = vmul.f32 %v1183, %v1190
          %v1193 = vmul.f32 %v1189, %v1191
          %v1194 = vsub.f32 2.0, %v1192
          %v1195 = vsub.f32 2.0, %v1193
          %v1196 = vmul.f32 %v1190, %v1194
          %v1197 = vmul.f32 %v1191, %v1195
          %v1198 = vld [vmem:[#allocation3] sm:$0xff]
          %v1199 = vld [vmem:[#allocation3 + $0x8] sm:$0xff]
          %v1200 = vpack.c.bf16 %v1199, %v1198
          %v1201 = vpack.c.bf16 %v1168, %v1168
          %v1202 = vpack.c.bf16 %v1169, %v1169
          %vm1203 = vcmask 64512
          %v1205 = vsel %vm1203, %v1200, 0
          %vm1207 = vcmask 1043456
          %v1209 = vsel %vm1207, %v1201, 0
          %v1212 = vsel %vm1207, %v1202, 0
          %1214 = vmatpush.bf16.msra.mxu0 0
          %1215 = vmatpush.bf16.msra.mxu0 0
          %1216 = vmatpush.bf16.msra.mxu0 0
          %1217 = vmatpush.bf16.msra.mxu0 0
          %1218 = vmatpush.bf16.msra.mxu0 0
          %1219 = vmatpush.bf16.msra.mxu0 0
          %1220 = vmatpush.bf16.msra.mxu0 0
          %1221 = vmatpush.bf16.msra.mxu0 %v1209
          %1222 = vmatmul.bf16.gmra.mxu0 %v1205
          %v1223 = vpop.f32.mrf.mxu0
          %v1224 = vadd.f32 0.0, %v1223
          %v1225 = vpop.f32.mrf.mxu0
          %v1226 = vadd.f32 0.0, %v1225
          %1227 = vdwg.mxu0
          %1228 = vmatpush.bf16.msra.mxu0 0
          %1229 = vmatpush.bf16.msra.mxu0 0
          %1230 = vmatpush.bf16.msra.mxu0 0
          %1231 = vmatpush.bf16.msra.mxu0 0
          %1232 = vmatpush.bf16.msra.mxu0 0
          %1233 = vmatpush.bf16.msra.mxu0 0
          %1234 = vmatpush.bf16.msra.mxu0 0
          %1235 = vmatpush.bf16.msra.mxu0 %v1212
          %1236 = vmatmul.bf16.gmra.mxu0 %v1205
          %v1237 = vpop.f32.mrf.mxu0
          %v1238 = vadd.f32 0.0, %v1237
          %v1239 = vpop.f32.mrf.mxu0
          %v1240 = vadd.f32 0.0, %v1239
          %1241 = vdwg.mxu0
          %v1242 = vmul.f32 %v1224, %v1196
          %v1243 = vmul.f32 %v1238, %v1197
          %v1244 = vmul.f32 %v1226, %v1196
          %v1245 = vmul.f32 %v1240, %v1197
          %s1246 = sld [smem:[#allocation11]]
          %s1247 = sld [smem:[#allocation11 + $0x1]]
          %v1248 = vmul.f32 %v1074, 2.0
          %v1249 = vmul.f32 %v1075, 2.0
          %v1250 = vmul.f32 %v1076, 2.0
          %v1251 = vmul.f32 %v1077, 2.0
          %v1252 = vstv %s1246
          %v1253 = vmul.f32 %v1252, %v1097
          %v1254 = vmul.f32 %v1252, %v1111
          %v1255 = vmul.f32 %v1252, %v1099
          %v1256 = vmul.f32 %v1252, %v1113
          %v1257 = vadd.f32 %v1248, %v1253
          %v1258 = vadd.f32 %v1249, %v1254
          %v1259 = vadd.f32 %v1250, %v1255
          %v1260 = vadd.f32 %v1251, %v1256
          %v1261 = vstv %s1247
          %v1262 = vmul.f32 %v1261, %v1242
          %v1263 = vmul.f32 %v1261, %v1243
          %v1264 = vmul.f32 %v1261, %v1244
          %v1265 = vmul.f32 %v1261, %v1245
          %v1266 = vadd.f32 %v1257, %v1262
          %v1267 = vadd.f32 %v1258, %v1263
          %v1268 = vadd.f32 %v1259, %v1264
          %v1269 = vadd.f32 %v1260, %v1265
          %1270 = vst [vmem:[%s438] sm:$0xff] %v1266
          %1271 = vst [vmem:[%s438 + $0x8] sm:$0xff] %v1267
          %1272 = vst [vmem:[%s438 + $0x10] sm:$0xff] %v1268
          %1273 = vst [vmem:[%s438 + $0x18] sm:$0xff] %v1269
          %v1274 = vpack.c.bf16 %v1111, %v1097
          %v1275 = vpack.c.bf16 %v1113, %v1099
          %1276 = vst [vmem:[%s445] sm:$0xff] %v1274
          %1277 = vst [vmem:[%s445 + $0x8] sm:$0xff] %v1275
          %v1278 = vpack.c.bf16 %v1243, %v1242
          %v1279 = vpack.c.bf16 %v1245, %v1244
          %1280 = vst [vmem:[%s452] sm:$0xff] %v1278
          %1281 = vst [vmem:[%s452 + $0x8] sm:$0xff] %v1279
        $region76: #{tpu_custom_call.1} parent=51 // pred_fallthru
          _
        %s1282 = sand.u32 %s242, 1
        %s1283 = scalar_lea.sflag [#allocation9], %s1282
        %s1284 = sand.u32 %s242, 1
        %s1285 = smul.addr %s1284, 32
        %s1286 = scalar_lea.vmem [#allocation12], %s1285
        %s1287 = sand.u32 %s32, 1
        %s1288 = scalar_lea.sflag [#allocation14], %s1287
        %s1289 = sand.u32 %s272, 1
        %s1290 = smul.addr %s1289, 16
        %s1291 = scalar_lea.vmem [#allocation13], %s1290
        %s1292 = sand.u32 %s32, 1
        %s1293 = scalar_lea.sflag [#allocation14], %s1292
        %s1294 = sand.u32 %s302, 1
        %s1295 = smul.addr %s1294, 16
        %s1296 = scalar_lea.vmem [#allocation15], %s1295
        // Predicated region
        $region77: #{tpu_custom_call.1} parent=51 // pred_check
          %p1297 = pneg %p252
        $region78: #{tpu_custom_call.1} parent=51 // pred_check_branch
          %1299 = sbr.rel (%p1297) target = $region80
        $region79: #{tpu_custom_call.1} parent=51 // pred_region
          %s1300 = smul.u32 %s39, %s38
          %s1301 = smul.u32 2, %s1300
          %1303 = vsyncadd %s1283, 0
          %s1304 = smul.addr %s37, 4
          %s1305 = sadd.s32 %s1301, %s1304
          %s1306 = smul.addr %s1305, 8
          %s1307 = scalar_lea.hbm %s8, %s1306
          %s1308 = sshll.u32 %s1286, 4
          %s1309 = int_to_ptr.vmem [resolvable:$true] %s1308
          %s1310 = sshll.u32 %s1307, 4
          %s1311 = int_to_ptr.hbm [resolvable:$true] %s1310
          %1316 = dma.vmem_to_hbm [thread:$0]  %s1309, 512, %s1311, %s1283, 256, 256, 16
        $region80: #{tpu_custom_call.1} parent=51 // pred_fallthru
          _
        // Predicated region
        $region81: #{tpu_custom_call.1} parent=51 // pred_check
          %p1317 = pneg %p282
        $region82: #{tpu_custom_call.1} parent=51 // pred_check_branch
          %1319 = sbr.rel (%p1317) target = $region84
        $region83: #{tpu_custom_call.1} parent=51 // pred_region
          %s1320 = smul.u32 %s39, %s38
          %s1321 = smul.u32 2, %s1320
          %1323 = vsyncadd %s1288, 0
          %s1324 = smul.addr %s37, 4
          %s1325 = sadd.s32 %s1321, %s1324
          %s1326 = smul.addr %s1325, 4
          %s1327 = scalar_lea.hbm %s9, %s1326
          %s1328 = sshll.u32 %s1291, 4
          %s1329 = int_to_ptr.vmem [resolvable:$true] %s1328
          %s1330 = sshll.u32 %s1327, 4
          %s1331 = int_to_ptr.hbm [resolvable:$true] %s1330
          %1336 = dma.vmem_to_hbm [thread:$0]  %s1329, 256, %s1331, %s1288, 128, 128, 8
        $region84: #{tpu_custom_call.1} parent=51 // pred_fallthru
          _
        // Predicated region
        $region85: #{tpu_custom_call.1} parent=51 // pred_check
          %p1337 = pneg %p312
        $region86: #{tpu_custom_call.1} parent=51 // pred_check_branch
          %1339 = sbr.rel (%p1337) target = $region88
        $region87: #{tpu_custom_call.1} parent=51 // pred_region
          %s1340 = smul.u32 %s39, %s38
          %s1341 = smul.u32 2, %s1340
          %1343 = vsyncadd %s1293, 0
          %s1344 = smul.addr %s37, 4
          %s1345 = sadd.s32 %s1341, %s1344
          %s1346 = smul.addr %s1345, 4
          %s1347 = scalar_lea.hbm %s10, %s1346
          %s1348 = sshll.u32 %s1296, 4
          %s1349 = int_to_ptr.vmem [resolvable:$true] %s1348
          %s1350 = sshll.u32 %s1347, 4
          %s1351 = int_to_ptr.hbm [resolvable:$true] %s1350
          %1356 = dma.vmem_to_hbm [thread:$0]  %s1349, 256, %s1351, %s1293, 128, 128, 8
        $region88: #{tpu_custom_call.1} parent=51 // pred_fallthru
          _
      $region52: #{tpu_custom_call.1} parent=5 // pred_fallthru
        _
      %p1357 = scmp.le.s32.totalorder 2, %s27
      // Predicated region
      $region89: #{tpu_custom_call.1} parent=5 // pred_check
        %p1358 = pneg %p1357
      $region90: #{tpu_custom_call.1} parent=5 // pred_check_branch
        %1360 = sbr.rel (%p1358) target = $region92
      $region91: #{tpu_custom_call.1} parent=5 // pred_region
        %s1361 = ssub.s32 %s27, 2
        // Predicated region
        $region93: #{tpu_custom_call.1} parent=91 // pred_check
          %p1362 = pneg %p258
        $region94: #{tpu_custom_call.1} parent=91 // pred_check_branch
          %1364 = sbr.rel (%p1362) target = $region96
        $region95: #{tpu_custom_call.1} parent=91 // pred_region
          %s1365 = sand.u32 %s243, 1
          %s1366 = scalar_lea.sflag [#allocation9], %s1365
          %s1367 = sand.u32 %s243, 1
          %s1368 = smul.addr %s1367, 32
          %s1369 = scalar_lea.vmem [#allocation12], %s1368
          %1371 = dma.done %s1366, 512
        $region96: #{tpu_custom_call.1} parent=91 // pred_fallthru
          _
        // Predicated region
        $region97: #{tpu_custom_call.1} parent=91 // pred_check
          %p1372 = pneg %p288
        $region98: #{tpu_custom_call.1} parent=91 // pred_check_branch
          %1374 = sbr.rel (%p1372) target = $region100
        $region99: #{tpu_custom_call.1} parent=91 // pred_region
          %s1375 = sand.u32 %s33, 1
          %s1376 = scalar_lea.sflag [#allocation14], %s1375
          %s1377 = sand.u32 %s273, 1
          %s1378 = smul.addr %s1377, 16
          %s1379 = scalar_lea.vmem [#allocation13], %s1378
          %1381 = dma.done %s1376, 256
        $region100: #{tpu_custom_call.1} parent=91 // pred_fallthru
          _
        // Predicated region
        $region101: #{tpu_custom_call.1} parent=91 // pred_check
          %p1382 = pneg %p318
        $region102: #{tpu_custom_call.1} parent=91 // pred_check_branch
          %1384 = sbr.rel (%p1382) target = $region104
        $region103: #{tpu_custom_call.1} parent=91 // pred_region
          %s1385 = sand.u32 %s33, 1
          %s1386 = scalar_lea.sflag [#allocation14], %s1385
          %s1387 = sand.u32 %s303, 1
          %s1388 = smul.addr %s1387, 16
          %s1389 = scalar_lea.vmem [#allocation15], %s1388
          %1391 = dma.done %s1386, 256
        $region104: #{tpu_custom_call.1} parent=91 // pred_fallthru
          _
      $region92: #{tpu_custom_call.1} parent=5 // pred_fallthru
        _
    $region6: #{tpu_custom_call.1} parent=1 // loop_footer
      %s31 = sadd.s32 1, %s27
    $region7: #{tpu_custom_call.1} parent=1 // loop_footer_branch
      %26 = sbr.rel target = $region3
    $region8: #{tpu_custom_call.1} parent=1 // loop_exit
      _
    %1392 = vsyncpa [#allocation8], 1
    %s1393 = scalar_lea.sflag [#allocation8], 1
    %1394 = vsyncpa %s1393, 1
    %1395 = vsyncpa [#allocation9], 1
    %s1396 = scalar_lea.sflag [#allocation9], 1
    %1397 = vsyncpa %s1396, 1
    %1398 = vsyncpa [#allocation14], 1
    %s1399 = scalar_lea.sflag [#allocation14], 1
    %1400 = vsyncpa %s1399, 1
    %1401 = vsyncpa [#allocation10], 1
    %s1402 = scalar_lea.sflag [#allocation10], 1
    %1403 = vsyncpa %s1402, 1

</llo_original>
